<compile_context>
chip_gen: v5e
topology: v5e:2x2
jax: 0.10.0
libtpu: 0.0.40
codegen_flags: <defaults>
</compile_context>

<pallas_src>
import functools

import jax
import jax.numpy as jnp
from jax.experimental import pallas as pl
from jax.experimental.pallas import tpu as pltpu


# Fixed DQN architecture (static Python constants, not traced).
CONV_KS = (8, 4, 3)
CONV_ST = (4, 2, 1)
CONV_OC = (32, 64, 64)
FC_HIDDEN = 512

VMEM_LIMIT = 32 * 1024 * 1024  # safe on v5e/v6e (128 MiB) and v7x (64 MiB phys)


def _round_up(x, m):
    return (x + m - 1) // m * m


def _pad_k(k):
    """Padded K (lane dim of x / sublane dim of w) used by the packed weights."""
    kp = _round_up(k, 128)
    if kp > 1024:
        kp = _round_up(k, 512)
    return kp


def _tm_for(m):
    """Tile/padded size for the row (M) dimension."""
    if m <= 256:
        tm = _round_up(m, 8)
        return tm, tm
    return 256, _round_up(m, 256)


# ----------------------------------------------------------------------------
# Pallas kernel 1: tiled (x @ w) + b [+ ReLU] with f32 VMEM accumulator
# ----------------------------------------------------------------------------
def _linear_kernel(x_ref, w_ref, b_ref, o_ref, acc_ref, *, relu):
    @pl.when(pl.program_id(2) == 0)
    def _():
        acc_ref[...] = jnp.zeros_like(acc_ref)

    # bf16 MXU inputs, f32 accumulation.
    acc_ref[...] += jnp.dot(
        x_ref[...].astype(jnp.bfloat16),
        w_ref[...],
        preferred_element_type=jnp.float32,
    )

    @pl.when(pl.program_id(2) == pl.num_programs(2) - 1)
    def _():
        out = acc_ref[...] + b_ref[...]
        if relu:
            out = jnp.maximum(out, 0.0)
        o_ref[...] = out.astype(o_ref.dtype)


def linear(x, w, b, *, relu):
    """x: (M, K) f32; w: (Kp, Np) bf16 pre-packed (zero rows beyond K);
    b: (1, Np) f32.  Returns (M, Np) f32 (caller slices padded N columns)."""
    M, K = x.shape
    Kp, Np = w.shape
    assert Kp >= K and Kp % 128 == 0 and Np % 128 == 0

    TM, Mp = _tm_for(M)
    TN = 256 if Np % 256 == 0 else 128
    TK = Kp if Kp <= 1024 else 512
    assert Kp % TK == 0 and Mp % TM == 0 and Np % TN == 0

    xp = x
    if (Mp, Kp) != (M, K):
        xp = jnp.pad(x, ((0, Mp - M), (0, Kp - K)))

    out = pl.pallas_call(
        functools.partial(_linear_kernel, relu=relu),
        out_shape=jax.ShapeDtypeStruct((Mp, Np), jnp.float32),
        grid=(Mp // TM, Np // TN, Kp // TK),
        in_specs=[
            pl.BlockSpec((TM, TK), lambda i, j, k: (i, k)),
            pl.BlockSpec((TK, TN), lambda i, j, k: (k, j)),
            pl.BlockSpec((1, TN), lambda i, j, k: (0, j)),
        ],
        out_specs=pl.BlockSpec((TM, TN), lambda i, j, k: (i, j)),
        scratch_shapes=[pltpu.VMEM((TM, TN), jnp.float32)],
        compiler_params=pltpu.CompilerParams(
            dimension_semantics=("parallel", "parallel", "arbitrary"),
            vmem_limit_bytes=VMEM_LIMIT,
        ),
    )(xp, w, b)
    return out[:M]


# ----------------------------------------------------------------------------
# Pallas kernel 2: fused FC head  relu(x@w1+b1) @ w2 + b2  (hidden stays in VMEM)
# ----------------------------------------------------------------------------
def _mlp_head_kernel(x_ref, w1_ref, b1_ref, w2_ref, b2_ref, o_ref):
    h = jnp.dot(
        x_ref[...].astype(jnp.bfloat16),
        w1_ref[...],
        preferred_element_type=jnp.float32,
    )
    h = jnp.maximum(h + b1_ref[...], 0.0)
    o = jnp.dot(
        h.astype(jnp.bfloat16),
        w2_ref[...],
        preferred_element_type=jnp.float32,
    )
    o_ref[...] = (o + b2_ref[...]).astype(o_ref.dtype)


def mlp_head(x, w1, b1, w2, b2):
    """x: (M, K) f32; w1: (K1p, H) bf16; w2: (H, Np2) bf16.  Returns (M, Np2)."""
    M, K = x.shape
    K1p, H = w1.shape
    _, Np2 = w2.shape
    assert K1p >= K and K1p % 128 == 0 and Np2 % 128 == 0

    TM, Mp = _tm_for(M)
    xp = x
    if (Mp, K1p) != (M, K):
        xp = jnp.pad(x, ((0, Mp - M), (0, K1p - K)))

    out = pl.pallas_call(
        _mlp_head_kernel,
        out_shape=jax.ShapeDtypeStruct((Mp, Np2), jnp.float32),
        grid=(Mp // TM,),
        in_specs=[
            pl.BlockSpec((TM, K1p), lambda i: (i, 0)),
            pl.BlockSpec((K1p, H), lambda i: (0, 0)),
            pl.BlockSpec((1, H), lambda i: (0, 0)),
            pl.BlockSpec((H, Np2), lambda i: (0, 0)),
            pl.BlockSpec((1, Np2), lambda i: (0, 0)),
        ],
        out_specs=pl.BlockSpec((TM, Np2), lambda i: (i, 0)),
        compiler_params=pltpu.CompilerParams(
            dimension_semantics=("parallel",),
            vmem_limit_bytes=VMEM_LIMIT,
        ),
    )(xp, w1, b1, w2, b2)
    return out[:M]


# ----------------------------------------------------------------------------
# Conv2d (valid padding, stride s) via im2col + tiled Pallas matmul kernel
# ----------------------------------------------------------------------------
def conv2d_relu(x_nhwc, w_packed, b_packed, *, stride, ksize, oc):
    B, H, W, C = x_nhwc.shape
    oh = (H - ksize) // stride + 1
    ow = (W - ksize) // stride + 1

    # im2col: strided slices only (XLA glue, no compute).
    patches = []
    for i in range(ksize):
        for j in range(ksize):
            patches.append(
                jax.lax.slice(
                    x_nhwc,
                    (0, i, j, 0),
                    (B, i + (oh - 1) * stride + 1, j + (ow - 1) * stride + 1, C),
                    (1, stride, stride, 1),
                )
            )
    p = jnp.stack(patches, axis=3).reshape(B * oh * ow, ksize * ksize * C)

    out = linear(p, w_packed, b_packed, relu=True)   # (B*oh*ow, Np) lane-dense
    out = out[:, :oc]                                # drop lane padding
    return out.reshape(B, oh, ow, oc)


# ----------------------------------------------------------------------------
# Full network forward
# ----------------------------------------------------------------------------
def network_forward(packed, x_nchw, *, num_actions):
    x = jnp.transpose(x_nchw, (0, 2, 3, 1))          # NCHW -> NHWC
    for l in range(3):
        x = conv2d_relu(
            x, packed[f"w{l + 1}"], packed[f"b{l + 1}"],
            stride=CONV_ST[l], ksize=CONV_KS[l], oc=CONV_OC[l],
        )
    B = x.shape[0]
    # NHWC flatten; wfc1 rows were pre-permuted at pack time so this matches
    # torch's `view(batch, -1)` on the NCHW conv output exactly.
    x = x.reshape(B, -1)
    out = mlp_head(x, packed["wfc1"], packed["bfc1"], packed["wfc2"], packed["bfc2"])
    return out[:, :num_actions]


# ----------------------------------------------------------------------------
# Parameter init (torch layouts) and one-time packing for the Pallas path
# ----------------------------------------------------------------------------
def _conv_out(o, k, s):
    return (o - k) // s + 1


def init_params(key, frames, num_actions):
    c_in, h, w = frames
    assert c_in == 4
    for k_, s_ in zip(CONV_KS, CONV_ST):
        h, w = _conv_out(h, k_, s_), _conv_out(w, k_, s_)
    fc_in = h * w * CONV_OC[-1]

    keys = jax.random.split(key, 10)
    scale = 0.05
    ics = (4,) + CONV_OC[:2]
    params = {}
    for l in range(3):
        params[f"w{l + 1}"] = scale * jax.random.normal(
            keys[2 * l], (CONV_OC[l], ics[l], CONV_KS[l], CONV_KS[l]), jnp.float32)
        params[f"b{l + 1}"] = scale * jax.random.normal(
            keys[2 * l + 1], (CONV_OC[l],), jnp.float32)
    params["wfc1"] = scale * jax.random.normal(keys[6], (fc_in, FC_HIDDEN), jnp.float32)
    params["bfc1"] = scale * jax.random.normal(keys[7], (FC_HIDDEN,), jnp.float32)
    params["wfc2"] = scale * jax.random.normal(keys[8], (FC_HIDDEN, num_actions), jnp.float32)
    params["bfc2"] = scale * jax.random.normal(keys[9], (num_actions,), jnp.float32)
    return params


def pack_params(raw, frames):
    """One-time packing: transposes, K/N zero-padding to 128 multiples, bf16
    weight cast, and folding the NCHW-flatten permutation into wfc1 rows."""
    _, h, w = frames
    packed = {}
    for l in range(3):
        ks, oc = CONV_KS[l], CONV_OC[l]
        w_oihw = raw[f"w{l + 1}"]
        ic = w_oihw.shape[1]
        k = ks * ks * ic
        kp = _pad_k(k)
        np_ = _round_up(oc, 128)
        # (OC,IC,KH,KW) -> (KH,KW,IC,OC) -> (KH*KW*IC, OC); matches im2col order.
        wmat = jnp.transpose(w_oihw, (2, 3, 1, 0)).reshape(k, oc)
        packed[f"w{l + 1}"] = jnp.pad(
            wmat, ((0, kp - k), (0, np_ - oc))).astype(jnp.bfloat16)
        packed[f"b{l + 1}"] = jnp.pad(
            raw[f"b{l + 1}"], (0, np_ - oc)).reshape(1, np_).astype(jnp.float32)
        h, w = _conv_out(h, ks, CONV_ST[l]), _conv_out(w, ks, CONV_ST[l])

    c_out = CONV_OC[-1]
    k1 = h * w * c_out
    k1p = _round_up(k1, 128)
    # Permute fc1 rows from torch (c,h,w) flatten order to NHWC (h,w,c) order.
    wfc1 = jnp.transpose(
        raw["wfc1"].reshape(c_out, h, w, FC_HIDDEN), (1, 2, 0, 3)
    ).reshape(k1, FC_HIDDEN)
    packed["wfc1"] = jnp.pad(wfc1, ((0, k1p - k1), (0, 0))).astype(jnp.bfloat16)
    packed["bfc1"] = raw["bfc1"].reshape(1, FC_HIDDEN).astype(jnp.float32)

    na = raw["wfc2"].shape[1]
    nap = _round_up(na, 128)
    packed["wfc2"] = jnp.pad(raw["wfc2"], ((0, 0), (0, nap - na))).astype(jnp.bfloat16)
    packed["bfc2"] = jnp.pad(raw["bfc2"], (0, nap - na)).reshape(1, nap).astype(jnp.float32)
    return packed


# ----------------------------------------------------------------------------
# Pure-JAX f32 reference (matches the PyTorch module semantics)
# ----------------------------------------------------------------------------
def reference_forward(raw, x_nchw):
    x = x_nchw
    for l in range(3):
        x = jax.lax.conv_general_dilated(
            x, raw[f"w{l + 1}"],
            window_strides=(CONV_ST[l], CONV_ST[l]),
            padding="VALID",
            dimension_numbers=("NCHW", "OIHW", "NCHW"),
        )
        x = jnp.maximum(x + raw[f"b{l + 1}"].reshape(1, -1, 1, 1), 0.0)
    B = x.shape[0]
    x = x.reshape(B, -1)                              # torch view(batch, -1) on NCHW
    x = jnp.maximum(x @ raw["wfc1"] + raw["bfc1"], 0.0)
    return x @ raw["wfc2"] + raw["bfc2"]


if __name__ == "__main__":
    # Smallest spatial size that survives the 3-conv stack: 36 -> 8 -> 3 -> 1.
    frames = (4, 36, 36)
    num_actions = 6
    batch_size = 2

    key = jax.random.PRNGKey(0)
    k_params, k_x = jax.random.split(key)
    raw = init_params(k_params, frames, num_actions)
    packed = pack_params(raw, frames)
    x = jax.random.normal(k_x, (batch_size,) + frames, jnp.float32)  # NCHW like torch

    fwd = jax.jit(functools.partial(network_forward, num_actions=num_actions))
    out = fwd(packed, x)
    jax.block_until_ready(out)

    assert out.shape == (batch_size, num_actions), out.shape
    assert out.dtype == jnp.float32

    # Relaxed tolerance: bf16 MXU inputs with f32 accumulation.
    ref = reference_forward(raw, x)
    err = float(jnp.max(jnp.abs(out - ref)))
    tol = 5e-2 * (float(jnp.max(jnp.abs(ref))) + 1.0)
    assert err <= tol, (err, tol)

    print("KERNEL_OK")
</pallas_src>

<mosaic_0001>
module attributes {stable_mosaic.version = 11 : i64} {
  func.func @_linear_kernel(%arg0: i32, %arg1: i32, %arg2: i32, %arg3: memref<128x256xf32, #tpu.memory_space<vmem>>, %arg4: memref<256x128xbf16, #tpu.memory_space<vmem>>, %arg5: memref<1x128xf32, #tpu.memory_space<vmem>>, %arg6: memref<128x128xf32, #tpu.memory_space<vmem>>, %arg7: memref<128x128xf32, #tpu.memory_space<vmem>>) attributes {dimension_semantics = [#tpu.dimension_semantics<parallel>, #tpu.dimension_semantics<parallel>, #tpu.dimension_semantics<arbitrary>], iteration_bounds = array<i64: 1, 1, 1>, scalar_prefetch = 0 : i64, scratch_operands = 1 : i64, tpu.core_type = #tpu.core_type<tc>, window_params = [{transform_indices = @transform_0, window_bounds = array<i64: 128, 256>}, {transform_indices = @transform_1, window_bounds = array<i64: 256, 128>}, {transform_indices = @transform_2, window_bounds = array<i64: 1, 128>}, {transform_indices = @transform_3, window_bounds = array<i64: 128, 128>}]} {
    %c0_i32 = arith.constant 0 : i32
    %0 = arith.cmpi eq, %arg2, %c0_i32 : i32
    %1 = arith.extui %0 : i1 to i32
    %c0_i32_0 = arith.constant 0 : i32
    %2 = arith.cmpi ne, %1, %c0_i32_0 : i32
    scf.if %2 {
      %cst_10 = arith.constant 0.000000e+00 : f32
      %13 = vector.broadcast %cst_10 : f32 to vector<128x128xf32>
      %c0_11 = arith.constant 0 : index
      %c0_12 = arith.constant 0 : index
      %14 = vector.load %arg7[%c0_11, %c0_12] : memref<128x128xf32, #tpu.memory_space<vmem>>, vector<128x128xf32>
      tpu.vector_store %arg7[%c0_11, %c0_12], %13 {strides = array<i32>} : memref<128x128xf32, #tpu.memory_space<vmem>>, vector<128x128xf32>,
    } else {
    }
    %c0 = arith.constant 0 : index
    %c0_1 = arith.constant 0 : index
    %3 = vector.load %arg7[%c0, %c0_1] : memref<128x128xf32, #tpu.memory_space<vmem>>, vector<128x128xf32>
    %c0_2 = arith.constant 0 : index
    %c0_3 = arith.constant 0 : index
    %4 = vector.load %arg3[%c0_2, %c0_3] : memref<128x256xf32, #tpu.memory_space<vmem>>, vector<128x256xf32>
    %5 = arith.truncf %4 : vector<128x256xf32> to vector<128x256xbf16>
    %c0_4 = arith.constant 0 : index
    %c0_5 = arith.constant 0 : index
    %6 = vector.load %arg4[%c0_4, %c0_5] : memref<256x128xbf16, #tpu.memory_space<vmem>>, vector<256x128xbf16>
    %cst = arith.constant dense<0.000000e+00> : vector<128x128xf32>
    %7 = tpu.matmul %5, %6, %cst {dimension_numbers = #tpu.dot_dimension_numbers<[1], [0], [0], [1], [0, 0, 1, 1], [], []>} : vector<128x256xbf16>, vector<256x128xbf16>, vector<128x128xf32> -> vector<128x128xf32>
    %8 = arith.addf %3, %7 : vector<128x128xf32>
    %c0_6 = arith.constant 0 : index
    %c0_7 = arith.constant 0 : index
    %9 = vector.load %arg7[%c0_6, %c0_7] : memref<128x128xf32, #tpu.memory_space<vmem>>, vector<128x128xf32>
    tpu.vector_store %arg7[%c0_6, %c0_7], %8 {strides = array<i32>} : memref<128x128xf32, #tpu.memory_space<vmem>>, vector<128x128xf32>,
    %c0_i32_8 = arith.constant 0 : i32
    %10 = arith.cmpi eq, %arg2, %c0_i32_8 : i32
    %11 = arith.extui %10 : i1 to i32
    %c0_i32_9 = arith.constant 0 : i32
    %12 = arith.cmpi ne, %11, %c0_i32_9 : i32
    scf.if %12 {
      %c0_10 = arith.constant 0 : index
      %c0_11 = arith.constant 0 : index
      %13 = vector.load %arg7[%c0_10, %c0_11] : memref<128x128xf32, #tpu.memory_space<vmem>>, vector<128x128xf32>
      %c0_12 = arith.constant 0 : index
      %c0_13 = arith.constant 0 : index
      %14 = vector.load %arg5[%c0_12, %c0_13] : memref<1x128xf32, #tpu.memory_space<vmem>>, vector<1x128xf32>
      %15 = vector.broadcast %14 : vector<1x128xf32> to vector<128x128xf32>
      %16 = arith.addf %13, %15 : vector<128x128xf32>
      %cst_14 = arith.constant 0.000000e+00 : f32
      %17 = vector.broadcast %cst_14 : f32 to vector<128x128xf32>
      %18 = arith.maximumf %16, %17 : vector<128x128xf32>
      %c0_15 = arith.constant 0 : index
      %c0_16 = arith.constant 0 : index
      %19 = vector.load %arg6[%c0_15, %c0_16] : memref<128x128xf32, #tpu.memory_space<vmem>>, vector<128x128xf32>
      tpu.vector_store %arg6[%c0_15, %c0_16], %18 {strides = array<i32>} : memref<128x128xf32, #tpu.memory_space<vmem>>, vector<128x128xf32>,
    } else {
    }
    return
  }
  func.func @transform_0(%arg0: i32, %arg1: i32, %arg2: i32) -> (i32, i32) {
    %c0_i32 = arith.constant 0 : i32
    return %arg0, %arg2 : i32, i32
  }
  func.func @transform_1(%arg0: i32, %arg1: i32, %arg2: i32) -> (i32, i32) {
    %c0_i32 = arith.constant 0 : i32
    return %arg2, %arg1 : i32, i32
  }
  func.func @transform_2(%arg0: i32, %arg1: i32, %arg2: i32) -> (i32, i32) {
    %c0_i32 = arith.constant 0 : i32
    %c0_i32_0 = arith.constant 0 : i32
    return %c0_i32, %arg1 : i32, i32
  }
  func.func @transform_3(%arg0: i32, %arg1: i32, %arg2: i32) -> (i32, i32) {
    %c0_i32 = arith.constant 0 : i32
    return %arg0, %arg1 : i32, i32
  }
}

module attributes {stable_mosaic.version = 11 : i64} {
  func.func @_linear_kernel(%arg0: i32, %arg1: i32, %arg2: i32, %arg3: memref<24x512xf32, #tpu.memory_space<vmem>>, %arg4: memref<512x128xbf16, #tpu.memory_space<vmem>>, %arg5: memref<1x128xf32, #tpu.memory_space<vmem>>, %arg6: memref<24x128xf32, #tpu.memory_space<vmem>>, %arg7: memref<24x128xf32, #tpu.memory_space<vmem>>) attributes {dimension_semantics = [#tpu.dimension_semantics<parallel>, #tpu.dimension_semantics<parallel>, #tpu.dimension_semantics<arbitrary>], iteration_bounds = array<i64: 1, 1, 1>, scalar_prefetch = 0 : i64, scratch_operands = 1 : i64, tpu.core_type = #tpu.core_type<tc>, window_params = [{transform_indices = @transform_0, window_bounds = array<i64: 24, 512>}, {transform_indices = @transform_1, window_bounds = array<i64: 512, 128>}, {transform_indices = @transform_2, window_bounds = array<i64: 1, 128>}, {transform_indices = @transform_3, window_bounds = array<i64: 24, 128>}]} {
    %c0_i32 = arith.constant 0 : i32
    %0 = arith.cmpi eq, %arg2, %c0_i32 : i32
    %1 = arith.extui %0 : i1 to i32
    %c0_i32_0 = arith.constant 0 : i32
    %2 = arith.cmpi ne, %1, %c0_i32_0 : i32
    scf.if %2 {
      %cst_10 = arith.constant 0.000000e+00 : f32
      %13 = vector.broadcast %cst_10 : f32 to vector<24x128xf32>
      %c0_11 = arith.constant 0 : index
      %c0_12 = arith.constant 0 : index
      %14 = vector.load %arg7[%c0_11, %c0_12] : memref<24x128xf32, #tpu.memory_space<vmem>>, vector<24x128xf32>
      tpu.vector_store %arg7[%c0_11, %c0_12], %13 {strides = array<i32>} : memref<24x128xf32, #tpu.memory_space<vmem>>, vector<24x128xf32>,
    } else {
    }
    %c0 = arith.constant 0 : index
    %c0_1 = arith.constant 0 : index
    %3 = vector.load %arg7[%c0, %c0_1] : memref<24x128xf32, #tpu.memory_space<vmem>>, vector<24x128xf32>
    %c0_2 = arith.constant 0 : index
    %c0_3 = arith.constant 0 : index
    %4 = vector.load %arg3[%c0_2, %c0_3] : memref<24x512xf32, #tpu.memory_space<vmem>>, vector<24x512xf32>
    %5 = arith.truncf %4 : vector<24x512xf32> to vector<24x512xbf16>
    %c0_4 = arith.constant 0 : index
    %c0_5 = arith.constant 0 : index
    %6 = vector.load %arg4[%c0_4, %c0_5] : memref<512x128xbf16, #tpu.memory_space<vmem>>, vector<512x128xbf16>
    %cst = arith.constant dense<0.000000e+00> : vector<24x128xf32>
    %7 = tpu.matmul %5, %6, %cst {dimension_numbers = #tpu.dot_dimension_numbers<[1], [0], [0], [1], [0, 0, 1, 1], [], []>} : vector<24x512xbf16>, vector<512x128xbf16>, vector<24x128xf32> -> vector<24x128xf32>
    %8 = arith.addf %3, %7 : vector<24x128xf32>
    %c0_6 = arith.constant 0 : index
    %c0_7 = arith.constant 0 : index
    %9 = vector.load %arg7[%c0_6, %c0_7] : memref<24x128xf32, #tpu.memory_space<vmem>>, vector<24x128xf32>
    tpu.vector_store %arg7[%c0_6, %c0_7], %8 {strides = array<i32>} : memref<24x128xf32, #tpu.memory_space<vmem>>, vector<24x128xf32>,
    %c0_i32_8 = arith.constant 0 : i32
    %10 = arith.cmpi eq, %arg2, %c0_i32_8 : i32
    %11 = arith.extui %10 : i1 to i32
    %c0_i32_9 = arith.constant 0 : i32
    %12 = arith.cmpi ne, %11, %c0_i32_9 : i32
    scf.if %12 {
      %c0_10 = arith.constant 0 : index
      %c0_11 = arith.constant 0 : index
      %13 = vector.load %arg7[%c0_10, %c0_11] : memref<24x128xf32, #tpu.memory_space<vmem>>, vector<24x128xf32>
      %c0_12 = arith.constant 0 : index
      %c0_13 = arith.constant 0 : index
      %14 = vector.load %arg5[%c0_12, %c0_13] : memref<1x128xf32, #tpu.memory_space<vmem>>, vector<1x128xf32>
      %15 = vector.broadcast %14 : vector<1x128xf32> to vector<24x128xf32>
      %16 = arith.addf %13, %15 : vector<24x128xf32>
      %cst_14 = arith.constant 0.000000e+00 : f32
      %17 = vector.broadcast %cst_14 : f32 to vector<24x128xf32>
      %18 = arith.maximumf %16, %17 : vector<24x128xf32>
      %c0_15 = arith.constant 0 : index
      %c0_16 = arith.constant 0 : index
      %19 = vector.load %arg6[%c0_15, %c0_16] : memref<24x128xf32, #tpu.memory_space<vmem>>, vector<24x128xf32>
      tpu.vector_store %arg6[%c0_15, %c0_16], %18 {strides = array<i32>} : memref<24x128xf32, #tpu.memory_space<vmem>>, vector<24x128xf32>,
    } else {
    }
    return
  }
  func.func @transform_0(%arg0: i32, %arg1: i32, %arg2: i32) -> (i32, i32) {
    %c0_i32 = arith.constant 0 : i32
    return %arg0, %arg2 : i32, i32
  }
  func.func @transform_1(%arg0: i32, %arg1: i32, %arg2: i32) -> (i32, i32) {
    %c0_i32 = arith.constant 0 : i32
    return %arg2, %arg1 : i32, i32
  }
  func.func @transform_2(%arg0: i32, %arg1: i32, %arg2: i32) -> (i32, i32) {
    %c0_i32 = arith.constant 0 : i32
    %c0_i32_0 = arith.constant 0 : i32
    return %c0_i32, %arg1 : i32, i32
  }
  func.func @transform_3(%arg0: i32, %arg1: i32, %arg2: i32) -> (i32, i32) {
    %c0_i32 = arith.constant 0 : i32
    return %arg0, %arg1 : i32, i32
  }
}

module attributes {stable_mosaic.version = 11 : i64} {
  func.func @_linear_kernel(%arg0: i32, %arg1: i32, %arg2: i32, %arg3: memref<8x640xf32, #tpu.memory_space<vmem>>, %arg4: memref<640x128xbf16, #tpu.memory_space<vmem>>, %arg5: memref<1x128xf32, #tpu.memory_space<vmem>>, %arg6: memref<8x128xf32, #tpu.memory_space<vmem>>, %arg7: memref<8x128xf32, #tpu.memory_space<vmem>>) attributes {dimension_semantics = [#tpu.dimension_semantics<parallel>, #tpu.dimension_semantics<parallel>, #tpu.dimension_semantics<arbitrary>], iteration_bounds = array<i64: 1, 1, 1>, scalar_prefetch = 0 : i64, scratch_operands = 1 : i64, tpu.core_type = #tpu.core_type<tc>, window_params = [{transform_indices = @transform_0, window_bounds = array<i64: 8, 640>}, {transform_indices = @transform_1, window_bounds = array<i64: 640, 128>}, {transform_indices = @transform_2, window_bounds = array<i64: 1, 128>}, {transform_indices = @transform_3, window_bounds = array<i64: 8, 128>}]} {
    %c0_i32 = arith.constant 0 : i32
    %0 = arith.cmpi eq, %arg2, %c0_i32 : i32
    %1 = arith.extui %0 : i1 to i32
    %c0_i32_0 = arith.constant 0 : i32
    %2 = arith.cmpi ne, %1, %c0_i32_0 : i32
    scf.if %2 {
      %cst_10 = arith.constant 0.000000e+00 : f32
      %13 = vector.broadcast %cst_10 : f32 to vector<8x128xf32>
      %c0_11 = arith.constant 0 : index
      %c0_12 = arith.constant 0 : index
      %14 = vector.load %arg7[%c0_11, %c0_12] : memref<8x128xf32, #tpu.memory_space<vmem>>, vector<8x128xf32>
      tpu.vector_store %arg7[%c0_11, %c0_12], %13 {strides = array<i32>} : memref<8x128xf32, #tpu.memory_space<vmem>>, vector<8x128xf32>,
    } else {
    }
    %c0 = arith.constant 0 : index
    %c0_1 = arith.constant 0 : index
    %3 = vector.load %arg7[%c0, %c0_1] : memref<8x128xf32, #tpu.memory_space<vmem>>, vector<8x128xf32>
    %c0_2 = arith.constant 0 : index
    %c0_3 = arith.constant 0 : index
    %4 = vector.load %arg3[%c0_2, %c0_3] : memref<8x640xf32, #tpu.memory_space<vmem>>, vector<8x640xf32>
    %5 = arith.truncf %4 : vector<8x640xf32> to vector<8x640xbf16>
    %c0_4 = arith.constant 0 : index
    %c0_5 = arith.constant 0 : index
    %6 = vector.load %arg4[%c0_4, %c0_5] : memref<640x128xbf16, #tpu.memory_space<vmem>>, vector<640x128xbf16>
    %cst = arith.constant dense<0.000000e+00> : vector<8x128xf32>
    %7 = tpu.matmul %5, %6, %cst {dimension_numbers = #tpu.dot_dimension_numbers<[1], [0], [0], [1], [0, 0, 1, 1], [], []>} : vector<8x640xbf16>, vector<640x128xbf16>, vector<8x128xf32> -> vector<8x128xf32>
    %8 = arith.addf %3, %7 : vector<8x128xf32>
    %c0_6 = arith.constant 0 : index
    %c0_7 = arith.constant 0 : index
    %9 = vector.load %arg7[%c0_6, %c0_7] : memref<8x128xf32, #tpu.memory_space<vmem>>, vector<8x128xf32>
    tpu.vector_store %arg7[%c0_6, %c0_7], %8 {strides = array<i32>} : memref<8x128xf32, #tpu.memory_space<vmem>>, vector<8x128xf32>,
    %c0_i32_8 = arith.constant 0 : i32
    %10 = arith.cmpi eq, %arg2, %c0_i32_8 : i32
    %11 = arith.extui %10 : i1 to i32
    %c0_i32_9 = arith.constant 0 : i32
    %12 = arith.cmpi ne, %11, %c0_i32_9 : i32
    scf.if %12 {
      %c0_10 = arith.constant 0 : index
      %c0_11 = arith.constant 0 : index
      %13 = vector.load %arg7[%c0_10, %c0_11] : memref<8x128xf32, #tpu.memory_space<vmem>>, vector<8x128xf32>
      %c0_12 = arith.constant 0 : index
      %c0_13 = arith.constant 0 : index
      %14 = vector.load %arg5[%c0_12, %c0_13] : memref<1x128xf32, #tpu.memory_space<vmem>>, vector<1x128xf32>
      %15 = vector.broadcast %14 : vector<1x128xf32> to vector<8x128xf32>
      %16 = arith.addf %13, %15 : vector<8x128xf32>
      %cst_14 = arith.constant 0.000000e+00 : f32
      %17 = vector.broadcast %cst_14 : f32 to vector<8x128xf32>
      %18 = arith.maximumf %16, %17 : vector<8x128xf32>
      %c0_15 = arith.constant 0 : index
      %c0_16 = arith.constant 0 : index
      %19 = vector.load %arg6[%c0_15, %c0_16] : memref<8x128xf32, #tpu.memory_space<vmem>>, vector<8x128xf32>
      tpu.vector_store %arg6[%c0_15, %c0_16], %18 {strides = array<i32>} : memref<8x128xf32, #tpu.memory_space<vmem>>, vector<8x128xf32>,
    } else {
    }
    return
  }
  func.func @transform_0(%arg0: i32, %arg1: i32, %arg2: i32) -> (i32, i32) {
    %c0_i32 = arith.constant 0 : i32
    return %arg0, %arg2 : i32, i32
  }
  func.func @transform_1(%arg0: i32, %arg1: i32, %arg2: i32) -> (i32, i32) {
    %c0_i32 = arith.constant 0 : i32
    return %arg2, %arg1 : i32, i32
  }
  func.func @transform_2(%arg0: i32, %arg1: i32, %arg2: i32) -> (i32, i32) {
    %c0_i32 = arith.constant 0 : i32
    %c0_i32_0 = arith.constant 0 : i32
    return %c0_i32, %arg1 : i32, i32
  }
  func.func @transform_3(%arg0: i32, %arg1: i32, %arg2: i32) -> (i32, i32) {
    %c0_i32 = arith.constant 0 : i32
    return %arg0, %arg1 : i32, i32
  }
}

module attributes {stable_mosaic.version = 11 : i64} {
  func.func @_mlp_head_kernel(%arg0: i32, %arg1: memref<8x128xf32, #tpu.memory_space<vmem>>, %arg2: memref<128x512xbf16, #tpu.memory_space<vmem>>, %arg3: memref<1x512xf32, #tpu.memory_space<vmem>>, %arg4: memref<512x128xbf16, #tpu.memory_space<vmem>>, %arg5: memref<1x128xf32, #tpu.memory_space<vmem>>, %arg6: memref<8x128xf32, #tpu.memory_space<vmem>>) attributes {dimension_semantics = [#tpu.dimension_semantics<parallel>], iteration_bounds = array<i64: 1>, scalar_prefetch = 0 : i64, scratch_operands = 0 : i64, tpu.core_type = #tpu.core_type<tc>, window_params = [{transform_indices = @transform_0, window_bounds = array<i64: 8, 128>}, {pipeline_mode = #tpu.pipeline_mode<synchronous>, transform_indices = @transform_1, window_bounds = array<i64: 128, 512>}, {pipeline_mode = #tpu.pipeline_mode<synchronous>, transform_indices = @transform_2, window_bounds = array<i64: 1, 512>}, {pipeline_mode = #tpu.pipeline_mode<synchronous>, transform_indices = @transform_3, window_bounds = array<i64: 512, 128>}, {pipeline_mode = #tpu.pipeline_mode<synchronous>, transform_indices = @transform_4, window_bounds = array<i64: 1, 128>}, {transform_indices = @transform_5, window_bounds = array<i64: 8, 128>}]} {
    %c0 = arith.constant 0 : index
    %c0_0 = arith.constant 0 : index
    %0 = vector.load %arg1[%c0, %c0_0] : memref<8x128xf32, #tpu.memory_space<vmem>>, vector<8x128xf32>
    %1 = arith.truncf %0 : vector<8x128xf32> to vector<8x128xbf16>
    %c0_1 = arith.constant 0 : index
    %c0_2 = arith.constant 0 : index
    %2 = vector.load %arg2[%c0_1, %c0_2] : memref<128x512xbf16, #tpu.memory_space<vmem>>, vector<128x512xbf16>
    %cst = arith.constant dense<0.000000e+00> : vector<8x512xf32>
    %3 = tpu.matmul %1, %2, %cst {dimension_numbers = #tpu.dot_dimension_numbers<[1], [0], [0], [1], [0, 0, 1, 1], [], []>} : vector<8x128xbf16>, vector<128x512xbf16>, vector<8x512xf32> -> vector<8x512xf32>
    %c0_3 = arith.constant 0 : index
    %c0_4 = arith.constant 0 : index
    %4 = vector.load %arg3[%c0_3, %c0_4] : memref<1x512xf32, #tpu.memory_space<vmem>>, vector<1x512xf32>
    %5 = vector.broadcast %4 : vector<1x512xf32> to vector<8x512xf32>
    %6 = arith.addf %3, %5 : vector<8x512xf32>
    %cst_5 = arith.constant 0.000000e+00 : f32
    %7 = vector.broadcast %cst_5 : f32 to vector<8x512xf32>
    %8 = arith.maximumf %6, %7 : vector<8x512xf32>
    %9 = arith.truncf %8 : vector<8x512xf32> to vector<8x512xbf16>
    %c0_6 = arith.constant 0 : index
    %c0_7 = arith.constant 0 : index
    %10 = vector.load %arg4[%c0_6, %c0_7] : memref<512x128xbf16, #tpu.memory_space<vmem>>, vector<512x128xbf16>
    %cst_8 = arith.constant dense<0.000000e+00> : vector<8x128xf32>
    %11 = tpu.matmul %9, %10, %cst_8 {dimension_numbers = #tpu.dot_dimension_numbers<[1], [0], [0], [1], [0, 0, 1, 1], [], []>} : vector<8x512xbf16>, vector<512x128xbf16>, vector<8x128xf32> -> vector<8x128xf32>
    %c0_9 = arith.constant 0 : index
    %c0_10 = arith.constant 0 : index
    %12 = vector.load %arg5[%c0_9, %c0_10] : memref<1x128xf32, #tpu.memory_space<vmem>>, vector<1x128xf32>
    %13 = vector.broadcast %12 : vector<1x128xf32> to vector<8x128xf32>
    %14 = arith.addf %11, %13 : vector<8x128xf32>
    %c0_11 = arith.constant 0 : index
    %c0_12 = arith.constant 0 : index
    %15 = vector.load %arg6[%c0_11, %c0_12] : memref<8x128xf32, #tpu.memory_space<vmem>>, vector<8x128xf32>
    tpu.vector_store %arg6[%c0_11, %c0_12], %14 {strides = array<i32>} : memref<8x128xf32, #tpu.memory_space<vmem>>, vector<8x128xf32>,
    return
  }
  func.func @transform_0(%arg0: i32) -> (i32, i32) {
    %c0_i32 = arith.constant 0 : i32
    %c0_i32_0 = arith.constant 0 : i32
    return %arg0, %c0_i32 : i32, i32
  }
  func.func @transform_1(%arg0: i32) -> (i32, i32) {
    %c0_i32 = arith.constant 0 : i32
    %c0_i32_0 = arith.constant 0 : i32
    %c0_i32_1 = arith.constant 0 : i32
    return %c0_i32, %c0_i32_0 : i32, i32
  }
  func.func @transform_2(%arg0: i32) -> (i32, i32) {
    %c0_i32 = arith.constant 0 : i32
    %c0_i32_0 = arith.constant 0 : i32
    %c0_i32_1 = arith.constant 0 : i32
    return %c0_i32, %c0_i32_0 : i32, i32
  }
  func.func @transform_3(%arg0: i32) -> (i32, i32) {
    %c0_i32 = arith.constant 0 : i32
    %c0_i32_0 = arith.constant 0 : i32
    %c0_i32_1 = arith.constant 0 : i32
    return %c0_i32, %c0_i32_0 : i32, i32
  }
  func.func @transform_4(%arg0: i32) -> (i32, i32) {
    %c0_i32 = arith.constant 0 : i32
    %c0_i32_0 = arith.constant 0 : i32
    %c0_i32_1 = arith.constant 0 : i32
    return %c0_i32, %c0_i32_0 : i32, i32
  }
  func.func @transform_5(%arg0: i32) -> (i32, i32) {
    %c0_i32 = arith.constant 0 : i32
    %c0_i32_0 = arith.constant 0 : i32
    return %arg0, %c0_i32 : i32, i32
  }
}

</mosaic_0001>

<llo_original>
// kernel: network_forward.4
$region0: #{network_forward.4}
  #allocation0 [shape = 'u32[]', space=smem, size = 0x4, offset = 0x4, fixed_abs, tag = 'smem constant byte address 0x4 - core index']
  #allocation1 [shape = 'u32[72,128]{1,0:T(1,128)}', space=vmem, size = 0x9000, scoped, tag = 'internal scratch']
  #allocation2 [shape = 'f32[128,128]{1,0:T(8,128)}', space=vmem, size = 0x10000, scoped, tag = 'scratch operand']
  %s0 = inlined_call_operand.vmem [shape: f32[128,256], index: 0, kind: input, shape index: {}]
  %s1 = inlined_call_operand.vmem [shape: bf16[256,128], index: 1, kind: input, shape index: {}]
  %s2 = inlined_call_operand.vmem [shape: f32[1,128], index: 2, kind: input, shape index: {}]
  %s3 = inlined_call_operand.vmem [shape: f32[128,128], index: 3, kind: output, shape index: {}]
  %s4 = sld [smem:[#allocation0]]
  $region30: #{network_forward.4} parent=0
    _
  %s6 = ssub.s32 1, %s4
  %s7 = scalar_select 0, %s6, %s4
  // Predicated region
  $region2: #{network_forward.4} parent=0 // pred_check
    _
  $region3: #{network_forward.4} parent=0 // pred_check_branch
    %9 = sbr.rel (0) target = $region5
  $region4: #{network_forward.4} parent=0 // pred_region
    _
  $region5: #{network_forward.4} parent=0 // pred_fallthru
    _
  // Predicated region
  $region6: #{network_forward.4} parent=0 // pred_check
    _
  $region7: #{network_forward.4} parent=0 // pred_check_branch
    %11 = sbr.rel (0) target = $region9
  $region8: #{network_forward.4} parent=0 // pred_region
    _
  $region9: #{network_forward.4} parent=0 // pred_fallthru
    _
  // Predicated region
  $region10: #{network_forward.4} parent=0 // pred_check
    _
  $region11: #{network_forward.4} parent=0 // pred_check_branch
    %13 = sbr.rel (0) target = $region13
  $region12: #{network_forward.4} parent=0 // pred_region
    _
  $region13: #{network_forward.4} parent=0 // pred_fallthru
    _
  %p14 = scmp.eq.s32.totalorder 0, 0
  // Predicated region
  $region14: #{network_forward.4} parent=0 // pred_check
    %p15 = pneg %p14
  $region15: #{network_forward.4} parent=0 // pred_check_branch
    %17 = sbr.rel (%p15) target = $region17
  $region16: #{network_forward.4} parent=0 // pred_region
    %18 = vst [vmem:[#allocation2] sm:$0xff] 0.0
    %19 = vst [vmem:[#allocation2 + $0x8] sm:$0xff] 0.0
    %20 = vst [vmem:[#allocation2 + $0x10] sm:$0xff] 0.0
    %21 = vst [vmem:[#allocation2 + $0x18] sm:$0xff] 0.0
    %22 = vst [vmem:[#allocation2 + $0x20] sm:$0xff] 0.0
    %23 = vst [vmem:[#allocation2 + $0x28] sm:$0xff] 0.0
    %24 = vst [vmem:[#allocation2 + $0x30] sm:$0xff] 0.0
    %25 = vst [vmem:[#allocation2 + $0x38] sm:$0xff] 0.0
    %26 = vst [vmem:[#allocation2 + $0x40] sm:$0xff] 0.0
    %27 = vst [vmem:[#allocation2 + $0x48] sm:$0xff] 0.0
    %28 = vst [vmem:[#allocation2 + $0x50] sm:$0xff] 0.0
    %29 = vst [vmem:[#allocation2 + $0x58] sm:$0xff] 0.0
    %30 = vst [vmem:[#allocation2 + $0x60] sm:$0xff] 0.0
    %31 = vst [vmem:[#allocation2 + $0x68] sm:$0xff] 0.0
    %32 = vst [vmem:[#allocation2 + $0x70] sm:$0xff] 0.0
    %33 = vst [vmem:[#allocation2 + $0x78] sm:$0xff] 0.0
  $region17: #{network_forward.4} parent=0 // pred_fallthru
    _
  %v34 = vld [vmem:[#allocation2] sm:$0xff]
  %v35 = vld [vmem:[#allocation2 + $0x8] sm:$0xff]
  %v36 = vld [vmem:[#allocation2 + $0x10] sm:$0xff]
  %v37 = vld [vmem:[#allocation2 + $0x18] sm:$0xff]
  %v38 = vld [vmem:[#allocation2 + $0x20] sm:$0xff]
  %v39 = vld [vmem:[#allocation2 + $0x28] sm:$0xff]
  %v40 = vld [vmem:[#allocation2 + $0x30] sm:$0xff]
  %v41 = vld [vmem:[#allocation2 + $0x38] sm:$0xff]
  %v42 = vld [vmem:[#allocation2 + $0x40] sm:$0xff]
  %v43 = vld [vmem:[#allocation2 + $0x48] sm:$0xff]
  %v44 = vld [vmem:[#allocation2 + $0x50] sm:$0xff]
  %v45 = vld [vmem:[#allocation2 + $0x58] sm:$0xff]
  %v46 = vld [vmem:[#allocation2 + $0x60] sm:$0xff]
  %v47 = vld [vmem:[#allocation2 + $0x68] sm:$0xff]
  %v48 = vld [vmem:[#allocation2 + $0x70] sm:$0xff]
  %v49 = vld [vmem:[#allocation2 + $0x78] sm:$0xff]
  %v50 = vld [vmem:[%s0] sm:$0xff]
  %v51 = vld [vmem:[%s0 + $0x8] sm:$0xff]
  %v52 = vld [vmem:[%s0 + $0x10] sm:$0xff]
  %v53 = vld [vmem:[%s0 + $0x18] sm:$0xff]
  %v54 = vld [vmem:[%s0 + $0x20] sm:$0xff]
  %v55 = vld [vmem:[%s0 + $0x28] sm:$0xff]
  %v56 = vld [vmem:[%s0 + $0x30] sm:$0xff]
  %v57 = vld [vmem:[%s0 + $0x38] sm:$0xff]
  %v58 = vld [vmem:[%s0 + $0x40] sm:$0xff]
  %v59 = vld [vmem:[%s0 + $0x48] sm:$0xff]
  %v60 = vld [vmem:[%s0 + $0x50] sm:$0xff]
  %v61 = vld [vmem:[%s0 + $0x58] sm:$0xff]
  %v62 = vld [vmem:[%s0 + $0x60] sm:$0xff]
  %v63 = vld [vmem:[%s0 + $0x68] sm:$0xff]
  %v64 = vld [vmem:[%s0 + $0x70] sm:$0xff]
  %v65 = vld [vmem:[%s0 + $0x78] sm:$0xff]
  %v66 = vld [vmem:[%s0 + $0x80] sm:$0xff]
  %v67 = vld [vmem:[%s0 + $0x88] sm:$0xff]
  %v68 = vld [vmem:[%s0 + $0x90] sm:$0xff]
  %v69 = vld [vmem:[%s0 + $0x98] sm:$0xff]
  %v70 = vld [vmem:[%s0 + $0xa0] sm:$0xff]
  %v71 = vld [vmem:[%s0 + $0xa8] sm:$0xff]
  %v72 = vld [vmem:[%s0 + $0xb0] sm:$0xff]
  %v73 = vld [vmem:[%s0 + $0xb8] sm:$0xff]
  %v74 = vld [vmem:[%s0 + $0xc0] sm:$0xff]
  %v75 = vld [vmem:[%s0 + $0xc8] sm:$0xff]
  %v76 = vld [vmem:[%s0 + $0xd0] sm:$0xff]
  %v77 = vld [vmem:[%s0 + $0xd8] sm:$0xff]
  %v78 = vld [vmem:[%s0 + $0xe0] sm:$0xff]
  %v79 = vld [vmem:[%s0 + $0xe8] sm:$0xff]
  %v80 = vld [vmem:[%s0 + $0xf0] sm:$0xff]
  %v81 = vld [vmem:[%s0 + $0xf8] sm:$0xff]
  %v82 = vpack.c.bf16 %v52, %v50
  %v83 = vpack.c.bf16 %v53, %v51
  %v84 = vpack.c.bf16 %v56, %v54
  %v85 = vpack.c.bf16 %v57, %v55
  %v86 = vpack.c.bf16 %v60, %v58
  %v87 = vpack.c.bf16 %v61, %v59
  %v88 = vpack.c.bf16 %v64, %v62
  %v89 = vpack.c.bf16 %v65, %v63
  %v90 = vpack.c.bf16 %v68, %v66
  %v91 = vpack.c.bf16 %v69, %v67
  %v92 = vpack.c.bf16 %v72, %v70
  %v93 = vpack.c.bf16 %v73, %v71
  %v94 = vpack.c.bf16 %v76, %v74
  %v95 = vpack.c.bf16 %v77, %v75
  %v96 = vpack.c.bf16 %v80, %v78
  %v97 = vpack.c.bf16 %v81, %v79
  %v98 = vld [vmem:[%s1] sm:$0xf]
  %v99 = vld [vmem:[%s1 + $0x4] sm:$0xf]
  %v100 = vld [vmem:[%s1 + $0x8] sm:$0xf]
  %v101 = vld [vmem:[%s1 + $0xc] sm:$0xf]
  %v102 = vld [vmem:[%s1 + $0x10] sm:$0xf]
  %v103 = vld [vmem:[%s1 + $0x14] sm:$0xf]
  %v104 = vld [vmem:[%s1 + $0x18] sm:$0xf]
  %v105 = vld [vmem:[%s1 + $0x1c] sm:$0xf]
  %v106 = vld [vmem:[%s1 + $0x20] sm:$0xf]
  %v107 = vld [vmem:[%s1 + $0x24] sm:$0xf]
  %v108 = vld [vmem:[%s1 + $0x28] sm:$0xf]
  %v109 = vld [vmem:[%s1 + $0x2c] sm:$0xf]
  %v110 = vld [vmem:[%s1 + $0x30] sm:$0xf]
  %v111 = vld [vmem:[%s1 + $0x34] sm:$0xf]
  %v112 = vld [vmem:[%s1 + $0x38] sm:$0xf]
  %v113 = vld [vmem:[%s1 + $0x3c] sm:$0xf]
  %v114 = vld [vmem:[%s1 + $0x40] sm:$0xf]
  %v115 = vld [vmem:[%s1 + $0x44] sm:$0xf]
  %v116 = vld [vmem:[%s1 + $0x48] sm:$0xf]
  %v117 = vld [vmem:[%s1 + $0x4c] sm:$0xf]
  %v118 = vld [vmem:[%s1 + $0x50] sm:$0xf]
  %v119 = vld [vmem:[%s1 + $0x54] sm:$0xf]
  %v120 = vld [vmem:[%s1 + $0x58] sm:$0xf]
  %v121 = vld [vmem:[%s1 + $0x5c] sm:$0xf]
  %v122 = vld [vmem:[%s1 + $0x60] sm:$0xf]
  %v123 = vld [vmem:[%s1 + $0x64] sm:$0xf]
  %v124 = vld [vmem:[%s1 + $0x68] sm:$0xf]
  %v125 = vld [vmem:[%s1 + $0x6c] sm:$0xf]
  %v126 = vld [vmem:[%s1 + $0x70] sm:$0xf]
  %v127 = vld [vmem:[%s1 + $0x74] sm:$0xf]
  %v128 = vld [vmem:[%s1 + $0x78] sm:$0xf]
  %v129 = vld [vmem:[%s1 + $0x7c] sm:$0xf]
  %v162 = vunpack.c.l.b16 %v98
  %v163 = vunpack.c.l.b16 %v99
  %v164 = vunpack.c.l.b16 %v100
  %v165 = vunpack.c.l.b16 %v101
  %v166 = vunpack.c.l.b16 %v102
  %v167 = vunpack.c.l.b16 %v103
  %v168 = vunpack.c.l.b16 %v104
  %v169 = vunpack.c.l.b16 %v105
  %v170 = vunpack.c.l.b16 %v106
  %v171 = vunpack.c.l.b16 %v107
  %v172 = vunpack.c.l.b16 %v108
  %v173 = vunpack.c.l.b16 %v109
  %v174 = vunpack.c.l.b16 %v110
  %v175 = vunpack.c.l.b16 %v111
  %v176 = vunpack.c.l.b16 %v112
  %v177 = vunpack.c.l.b16 %v113
  %v178 = vunpack.c.l.b16 %v114
  %v179 = vunpack.c.l.b16 %v115
  %v180 = vunpack.c.l.b16 %v116
  %v181 = vunpack.c.l.b16 %v117
  %v182 = vunpack.c.l.b16 %v118
  %v183 = vunpack.c.l.b16 %v119
  %v184 = vunpack.c.l.b16 %v120
  %v185 = vunpack.c.l.b16 %v121
  %v186 = vunpack.c.l.b16 %v122
  %v187 = vunpack.c.l.b16 %v123
  %v188 = vunpack.c.l.b16 %v124
  %v189 = vunpack.c.l.b16 %v125
  %v190 = vunpack.c.l.b16 %v126
  %v191 = vunpack.c.l.b16 %v127
  %v192 = vunpack.c.l.b16 %v128
  %v193 = vunpack.c.l.b16 %v129
  %v194 = vpack.c.b16 %v163, %v162
  %v195 = vpack.c.b16 %v165, %v164
  %v196 = vpack.c.b16 %v167, %v166
  %v197 = vpack.c.b16 %v169, %v168
  %v198 = vpack.c.b16 %v171, %v170
  %v199 = vpack.c.b16 %v173, %v172
  %v200 = vpack.c.b16 %v175, %v174
  %v201 = vpack.c.b16 %v177, %v176
  %v202 = vpack.c.b16 %v179, %v178
  %v203 = vpack.c.b16 %v181, %v180
  %v204 = vpack.c.b16 %v183, %v182
  %v205 = vpack.c.b16 %v185, %v184
  %v206 = vpack.c.b16 %v187, %v186
  %v207 = vpack.c.b16 %v189, %v188
  %v208 = vpack.c.b16 %v191, %v190
  %v209 = vpack.c.b16 %v193, %v192
  %226 = vmatpush.bf16.msra.mxu0 %v201
  %227 = vmatpush.bf16.msra.mxu0 %v200
  %228 = vmatpush.bf16.msra.mxu0 %v199
  %229 = vmatpush.bf16.msra.mxu0 %v198
  %230 = vmatpush.bf16.msra.mxu0 %v197
  %231 = vmatpush.bf16.msra.mxu0 %v196
  %232 = vmatpush.bf16.msra.mxu0 %v195
  %233 = vmatpush.bf16.msra.mxu0 %v194
  %234 = vmatmul.bf16.gmra.mxu0 %v82
  %v235 = vpop.f32.mrf.mxu0
  %v236 = vadd.f32 0.0, %v235
  %v237 = vpop.f32.mrf.mxu0
  %v238 = vadd.f32 0.0, %v237
  %239 = vmatmul.bf16.gmra.mxu0 %v84
  %v240 = vpop.f32.mrf.mxu0
  %v241 = vadd.f32 0.0, %v240
  %v242 = vpop.f32.mrf.mxu0
  %v243 = vadd.f32 0.0, %v242
  %244 = vmatmul.bf16.gmra.mxu0 %v86
  %v245 = vpop.f32.mrf.mxu0
  %v246 = vadd.f32 0.0, %v245
  %v247 = vpop.f32.mrf.mxu0
  %v248 = vadd.f32 0.0, %v247
  %249 = vmatmul.bf16.gmra.mxu0 %v88
  %v250 = vpop.f32.mrf.mxu0
  %v251 = vadd.f32 0.0, %v250
  %v252 = vpop.f32.mrf.mxu0
  %v253 = vadd.f32 0.0, %v252
  %254 = vmatmul.bf16.gmra.mxu0 %v90
  %v255 = vpop.f32.mrf.mxu0
  %v256 = vadd.f32 0.0, %v255
  %v257 = vpop.f32.mrf.mxu0
  %v258 = vadd.f32 0.0, %v257
  %259 = vmatmul.bf16.gmra.mxu0 %v92
  %v260 = vpop.f32.mrf.mxu0
  %v261 = vadd.f32 0.0, %v260
  %v262 = vpop.f32.mrf.mxu0
  %v263 = vadd.f32 0.0, %v262
  %264 = vmatmul.bf16.gmra.mxu0 %v94
  %v265 = vpop.f32.mrf.mxu0
  %v266 = vadd.f32 0.0, %v265
  %v267 = vpop.f32.mrf.mxu0
  %v268 = vadd.f32 0.0, %v267
  %269 = vmatmul.bf16.gmra.mxu0 %v96
  %v270 = vpop.f32.mrf.mxu0
  %v271 = vadd.f32 0.0, %v270
  %v272 = vpop.f32.mrf.mxu0
  %v273 = vadd.f32 0.0, %v272
  %274 = vdwg.mxu0
  %275 = vmatpush.bf16.msra.mxu0 %v209
  %276 = vmatpush.bf16.msra.mxu0 %v208
  %277 = vmatpush.bf16.msra.mxu0 %v207
  %278 = vmatpush.bf16.msra.mxu0 %v206
  %279 = vmatpush.bf16.msra.mxu0 %v205
  %280 = vmatpush.bf16.msra.mxu0 %v204
  %281 = vmatpush.bf16.msra.mxu0 %v203
  %282 = vmatpush.bf16.msra.mxu0 %v202
  %283 = vmatmul.bf16.gmra.mxu0 %v83
  %v284 = vpop.f32.mrf.mxu0
  %v285 = vadd.f32 %v236, %v284
  %v286 = vpop.f32.mrf.mxu0
  %v287 = vadd.f32 %v238, %v286
  %288 = vmatmul.bf16.gmra.mxu0 %v85
  %v289 = vpop.f32.mrf.mxu0
  %v290 = vadd.f32 %v241, %v289
  %v291 = vpop.f32.mrf.mxu0
  %v292 = vadd.f32 %v243, %v291
  %293 = vmatmul.bf16.gmra.mxu0 %v87
  %v294 = vpop.f32.mrf.mxu0
  %v295 = vadd.f32 %v246, %v294
  %v296 = vpop.f32.mrf.mxu0
  %v297 = vadd.f32 %v248, %v296
  %298 = vmatmul.bf16.gmra.mxu0 %v89
  %v299 = vpop.f32.mrf.mxu0
  %v300 = vadd.f32 %v251, %v299
  %v301 = vpop.f32.mrf.mxu0
  %v302 = vadd.f32 %v253, %v301
  %303 = vmatmul.bf16.gmra.mxu0 %v91
  %v304 = vpop.f32.mrf.mxu0
  %v305 = vadd.f32 %v256, %v304
  %v306 = vpop.f32.mrf.mxu0
  %v307 = vadd.f32 %v258, %v306
  %308 = vmatmul.bf16.gmra.mxu0 %v93
  %v309 = vpop.f32.mrf.mxu0
  %v310 = vadd.f32 %v261, %v309
  %v311 = vpop.f32.mrf.mxu0
  %v312 = vadd.f32 %v263, %v311
  %313 = vmatmul.bf16.gmra.mxu0 %v95
  %v314 = vpop.f32.mrf.mxu0
  %v315 = vadd.f32 %v266, %v314
  %v316 = vpop.f32.mrf.mxu0
  %v317 = vadd.f32 %v268, %v316
  %318 = vmatmul.bf16.gmra.mxu0 %v97
  %v319 = vpop.f32.mrf.mxu0
  %v320 = vadd.f32 %v271, %v319
  %v321 = vpop.f32.mrf.mxu0
  %v322 = vadd.f32 %v273, %v321
  %323 = vdwg.mxu0
  %v324 = vadd.f32 %v34, %v285
  %v325 = vadd.f32 %v35, %v287
  %v326 = vadd.f32 %v36, %v290
  %v327 = vadd.f32 %v37, %v292
  %v328 = vadd.f32 %v38, %v295
  %v329 = vadd.f32 %v39, %v297
  %v330 = vadd.f32 %v40, %v300
  %v331 = vadd.f32 %v41, %v302
  %v332 = vadd.f32 %v42, %v305
  %v333 = vadd.f32 %v43, %v307
  %v334 = vadd.f32 %v44, %v310
  %v335 = vadd.f32 %v45, %v312
  %v336 = vadd.f32 %v46, %v315
  %v337 = vadd.f32 %v47, %v317
  %v338 = vadd.f32 %v48, %v320
  %v339 = vadd.f32 %v49, %v322
  %340 = vst [vmem:[#allocation2] sm:$0xff] %v324
  %341 = vst [vmem:[#allocation2 + $0x8] sm:$0xff] %v325
  %342 = vst [vmem:[#allocation2 + $0x10] sm:$0xff] %v326
  %343 = vst [vmem:[#allocation2 + $0x18] sm:$0xff] %v327
  %344 = vst [vmem:[#allocation2 + $0x20] sm:$0xff] %v328
  %345 = vst [vmem:[#allocation2 + $0x28] sm:$0xff] %v329
  %346 = vst [vmem:[#allocation2 + $0x30] sm:$0xff] %v330
  %347 = vst [vmem:[#allocation2 + $0x38] sm:$0xff] %v331
  %348 = vst [vmem:[#allocation2 + $0x40] sm:$0xff] %v332
  %349 = vst [vmem:[#allocation2 + $0x48] sm:$0xff] %v333
  %350 = vst [vmem:[#allocation2 + $0x50] sm:$0xff] %v334
  %351 = vst [vmem:[#allocation2 + $0x58] sm:$0xff] %v335
  %352 = vst [vmem:[#allocation2 + $0x60] sm:$0xff] %v336
  %353 = vst [vmem:[#allocation2 + $0x68] sm:$0xff] %v337
  %354 = vst [vmem:[#allocation2 + $0x70] sm:$0xff] %v338
  %355 = vst [vmem:[#allocation2 + $0x78] sm:$0xff] %v339
  // Predicated region
  $region18: #{network_forward.4} parent=0 // pred_check
    %p356 = pneg %p14
  $region19: #{network_forward.4} parent=0 // pred_check_branch
    %358 = sbr.rel (%p356) target = $region21
  $region20: #{network_forward.4} parent=0 // pred_region
    %v359 = vld [vmem:[#allocation2] sm:$0xff]
    %v360 = vld [vmem:[#allocation2 + $0x8] sm:$0xff]
    %v361 = vld [vmem:[#allocation2 + $0x10] sm:$0xff]
    %v362 = vld [vmem:[#allocation2 + $0x18] sm:$0xff]
    %v363 = vld [vmem:[#allocation2 + $0x20] sm:$0xff]
    %v364 = vld [vmem:[#allocation2 + $0x28] sm:$0xff]
    %v365 = vld [vmem:[#allocation2 + $0x30] sm:$0xff]
    %v366 = vld [vmem:[#allocation2 + $0x38] sm:$0xff]
    %v367 = vld [vmem:[#allocation2 + $0x40] sm:$0xff]
    %v368 = vld [vmem:[#allocation2 + $0x48] sm:$0xff]
    %v369 = vld [vmem:[#allocation2 + $0x50] sm:$0xff]
    %v370 = vld [vmem:[#allocation2 + $0x58] sm:$0xff]
    %v371 = vld [vmem:[#allocation2 + $0x60] sm:$0xff]
    %v372 = vld [vmem:[#allocation2 + $0x68] sm:$0xff]
    %v373 = vld [vmem:[#allocation2 + $0x70] sm:$0xff]
    %v374 = vld [vmem:[#allocation2 + $0x78] sm:$0xff]
    %v375 = vld [vmem:[%s2] sm:$0x1]
    %v377 = vperm.slane %v375, 0
    %v379 = vadd.f32 %v359, %v377
    %v380 = vadd.f32 %v360, %v377
    %v381 = vadd.f32 %v361, %v377
    %v382 = vadd.f32 %v362, %v377
    %v383 = vadd.f32 %v363, %v377
    %v384 = vadd.f32 %v364, %v377
    %v385 = vadd.f32 %v365, %v377
    %v386 = vadd.f32 %v366, %v377
    %v387 = vadd.f32 %v367, %v377
    %v388 = vadd.f32 %v368, %v377
    %v389 = vadd.f32 %v369, %v377
    %v390 = vadd.f32 %v370, %v377
    %v391 = vadd.f32 %v371, %v377
    %v392 = vadd.f32 %v372, %v377
    %v393 = vadd.f32 %v373, %v377
    %v394 = vadd.f32 %v374, %v377
    %v395 = vmax.f32 %v379, 0.0
    %v396 = vmax.f32 %v380, 0.0
    %v397 = vmax.f32 %v381, 0.0
    %v398 = vmax.f32 %v382, 0.0
    %v399 = vmax.f32 %v383, 0.0
    %v400 = vmax.f32 %v384, 0.0
    %v401 = vmax.f32 %v385, 0.0
    %v402 = vmax.f32 %v386, 0.0
    %v403 = vmax.f32 %v387, 0.0
    %v404 = vmax.f32 %v388, 0.0
    %v405 = vmax.f32 %v389, 0.0
    %v406 = vmax.f32 %v390, 0.0
    %v407 = vmax.f32 %v391, 0.0
    %v408 = vmax.f32 %v392, 0.0
    %v409 = vmax.f32 %v393, 0.0
    %v410 = vmax.f32 %v394, 0.0
    %411 = vst [vmem:[%s3] sm:$0xff] %v395
    %412 = vst [vmem:[%s3 + $0x8] sm:$0xff] %v396
    %413 = vst [vmem:[%s3 + $0x10] sm:$0xff] %v397
    %414 = vst [vmem:[%s3 + $0x18] sm:$0xff] %v398
    %415 = vst [vmem:[%s3 + $0x20] sm:$0xff] %v399
    %416 = vst [vmem:[%s3 + $0x28] sm:$0xff] %v400
    %417 = vst [vmem:[%s3 + $0x30] sm:$0xff] %v401
    %418 = vst [vmem:[%s3 + $0x38] sm:$0xff] %v402
    %419 = vst [vmem:[%s3 + $0x40] sm:$0xff] %v403
    %420 = vst [vmem:[%s3 + $0x48] sm:$0xff] %v404
    %421 = vst [vmem:[%s3 + $0x50] sm:$0xff] %v405
    %422 = vst [vmem:[%s3 + $0x58] sm:$0xff] %v406
    %423 = vst [vmem:[%s3 + $0x60] sm:$0xff] %v407
    %424 = vst [vmem:[%s3 + $0x68] sm:$0xff] %v408
    %425 = vst [vmem:[%s3 + $0x70] sm:$0xff] %v409
    %426 = vst [vmem:[%s3 + $0x78] sm:$0xff] %v410
  $region21: #{network_forward.4} parent=0 // pred_fallthru
    _
  // Predicated region
  $region22: #{network_forward.4} parent=0 // pred_check
    _
  $region23: #{network_forward.4} parent=0 // pred_check_branch
    %428 = sbr.rel (0) target = $region25
  $region24: #{network_forward.4} parent=0 // pred_region
    _
  $region25: #{network_forward.4} parent=0 // pred_fallthru
    _
  // Predicated region
  $region26: #{network_forward.4} parent=0 // pred_check
    _
  $region27: #{network_forward.4} parent=0 // pred_check_branch
    %430 = sbr.rel (0) target = $region29
  $region28: #{network_forward.4} parent=0 // pred_region
    _
  $region29: #{network_forward.4} parent=0 // pred_fallthru
    _

// kernel: network_forward.5
$region0: #{network_forward.5}
  #allocation0 [shape = 'u32[]', space=smem, size = 0x4, offset = 0x4, fixed_abs, tag = 'smem constant byte address 0x4 - core index']
  #allocation1 [shape = 'u32[72,128]{1,0:T(1,128)}', space=vmem, size = 0x9000, scoped, tag = 'internal scratch']
  #allocation2 [shape = 'f32[24,128]{1,0:T(8,128)}', space=vmem, size = 0x3000, scoped, tag = 'scratch operand']
  %s0 = inlined_call_operand.vmem [shape: f32[24,512], index: 0, kind: input, shape index: {}]
  %s1 = inlined_call_operand.vmem [shape: bf16[512,128], index: 1, kind: input, shape index: {}]
  %s2 = inlined_call_operand.vmem [shape: f32[1,128], index: 2, kind: input, shape index: {}]
  %s3 = inlined_call_operand.vmem [shape: f32[24,128], index: 3, kind: output, shape index: {}]
  %s4 = sld [smem:[#allocation0]]
  $region30: #{network_forward.5} parent=0
    _
  %s6 = ssub.s32 1, %s4
  %s7 = scalar_select 0, %s6, %s4
  // Predicated region
  $region2: #{network_forward.5} parent=0 // pred_check
    _
  $region3: #{network_forward.5} parent=0 // pred_check_branch
    %9 = sbr.rel (0) target = $region5
  $region4: #{network_forward.5} parent=0 // pred_region
    _
  $region5: #{network_forward.5} parent=0 // pred_fallthru
    _
  // Predicated region
  $region6: #{network_forward.5} parent=0 // pred_check
    _
  $region7: #{network_forward.5} parent=0 // pred_check_branch
    %11 = sbr.rel (0) target = $region9
  $region8: #{network_forward.5} parent=0 // pred_region
    _
  $region9: #{network_forward.5} parent=0 // pred_fallthru
    _
  // Predicated region
  $region10: #{network_forward.5} parent=0 // pred_check
    _
  $region11: #{network_forward.5} parent=0 // pred_check_branch
    %13 = sbr.rel (0) target = $region13
  $region12: #{network_forward.5} parent=0 // pred_region
    _
  $region13: #{network_forward.5} parent=0 // pred_fallthru
    _
  %p14 = scmp.eq.s32.totalorder 0, 0
  // Predicated region
  $region14: #{network_forward.5} parent=0 // pred_check
    %p15 = pneg %p14
  $region15: #{network_forward.5} parent=0 // pred_check_branch
    %17 = sbr.rel (%p15) target = $region17
  $region16: #{network_forward.5} parent=0 // pred_region
    %18 = vst [vmem:[#allocation2] sm:$0xff] 0.0
    %19 = vst [vmem:[#allocation2 + $0x8] sm:$0xff] 0.0
    %20 = vst [vmem:[#allocation2 + $0x10] sm:$0xff] 0.0
  $region17: #{network_forward.5} parent=0 // pred_fallthru
    _
  %v21 = vld [vmem:[#allocation2] sm:$0xff]
  %v22 = vld [vmem:[#allocation2 + $0x8] sm:$0xff]
  %v23 = vld [vmem:[#allocation2 + $0x10] sm:$0xff]
  %v24 = vld [vmem:[%s0] sm:$0xff]
  %v25 = vld [vmem:[%s0 + $0x8] sm:$0xff]
  %v26 = vld [vmem:[%s0 + $0x10] sm:$0xff]
  %v27 = vld [vmem:[%s0 + $0x18] sm:$0xff]
  %v28 = vld [vmem:[%s0 + $0x20] sm:$0xff]
  %v29 = vld [vmem:[%s0 + $0x28] sm:$0xff]
  %v30 = vld [vmem:[%s0 + $0x30] sm:$0xff]
  %v31 = vld [vmem:[%s0 + $0x38] sm:$0xff]
  %v32 = vld [vmem:[%s0 + $0x40] sm:$0xff]
  %v33 = vld [vmem:[%s0 + $0x48] sm:$0xff]
  %v34 = vld [vmem:[%s0 + $0x50] sm:$0xff]
  %v35 = vld [vmem:[%s0 + $0x58] sm:$0xff]
  %v36 = vpack.c.bf16 %v28, %v24
  %v37 = vpack.c.bf16 %v29, %v25
  %v38 = vpack.c.bf16 %v30, %v26
  %v39 = vpack.c.bf16 %v31, %v27
  %v40 = vpack.c.bf16 %v32, %v32
  %v41 = vpack.c.bf16 %v33, %v33
  %v42 = vpack.c.bf16 %v34, %v34
  %v43 = vpack.c.bf16 %v35, %v35
  %v44 = vld [vmem:[%s1] sm:$0xf]
  %v45 = vld [vmem:[%s1 + $0x4] sm:$0xf]
  %v46 = vld [vmem:[%s1 + $0x8] sm:$0xf]
  %v47 = vld [vmem:[%s1 + $0xc] sm:$0xf]
  %v48 = vld [vmem:[%s1 + $0x10] sm:$0xf]
  %v49 = vld [vmem:[%s1 + $0x14] sm:$0xf]
  %v50 = vld [vmem:[%s1 + $0x18] sm:$0xf]
  %v51 = vld [vmem:[%s1 + $0x1c] sm:$0xf]
  %v52 = vld [vmem:[%s1 + $0x20] sm:$0xf]
  %v53 = vld [vmem:[%s1 + $0x24] sm:$0xf]
  %v54 = vld [vmem:[%s1 + $0x28] sm:$0xf]
  %v55 = vld [vmem:[%s1 + $0x2c] sm:$0xf]
  %v56 = vld [vmem:[%s1 + $0x30] sm:$0xf]
  %v57 = vld [vmem:[%s1 + $0x34] sm:$0xf]
  %v58 = vld [vmem:[%s1 + $0x38] sm:$0xf]
  %v59 = vld [vmem:[%s1 + $0x3c] sm:$0xf]
  %v60 = vld [vmem:[%s1 + $0x40] sm:$0xf]
  %v61 = vld [vmem:[%s1 + $0x44] sm:$0xf]
  %v62 = vld [vmem:[%s1 + $0x48] sm:$0xf]
  %v63 = vld [vmem:[%s1 + $0x4c] sm:$0xf]
  %v64 = vld [vmem:[%s1 + $0x50] sm:$0xf]
  %v65 = vld [vmem:[%s1 + $0x54] sm:$0xf]
  %v66 = vld [vmem:[%s1 + $0x58] sm:$0xf]
  %v67 = vld [vmem:[%s1 + $0x5c] sm:$0xf]
  %v68 = vld [vmem:[%s1 + $0x60] sm:$0xf]
  %v69 = vld [vmem:[%s1 + $0x64] sm:$0xf]
  %v70 = vld [vmem:[%s1 + $0x68] sm:$0xf]
  %v71 = vld [vmem:[%s1 + $0x6c] sm:$0xf]
  %v72 = vld [vmem:[%s1 + $0x70] sm:$0xf]
  %v73 = vld [vmem:[%s1 + $0x74] sm:$0xf]
  %v74 = vld [vmem:[%s1 + $0x78] sm:$0xf]
  %v75 = vld [vmem:[%s1 + $0x7c] sm:$0xf]
  %v76 = vld [vmem:[%s1 + $0x80] sm:$0xf]
  %v77 = vld [vmem:[%s1 + $0x84] sm:$0xf]
  %v78 = vld [vmem:[%s1 + $0x88] sm:$0xf]
  %v79 = vld [vmem:[%s1 + $0x8c] sm:$0xf]
  %v80 = vld [vmem:[%s1 + $0x90] sm:$0xf]
  %v81 = vld [vmem:[%s1 + $0x94] sm:$0xf]
  %v82 = vld [vmem:[%s1 + $0x98] sm:$0xf]
  %v83 = vld [vmem:[%s1 + $0x9c] sm:$0xf]
  %v84 = vld [vmem:[%s1 + $0xa0] sm:$0xf]
  %v85 = vld [vmem:[%s1 + $0xa4] sm:$0xf]
  %v86 = vld [vmem:[%s1 + $0xa8] sm:$0xf]
  %v87 = vld [vmem:[%s1 + $0xac] sm:$0xf]
  %v88 = vld [vmem:[%s1 + $0xb0] sm:$0xf]
  %v89 = vld [vmem:[%s1 + $0xb4] sm:$0xf]
  %v90 = vld [vmem:[%s1 + $0xb8] sm:$0xf]
  %v91 = vld [vmem:[%s1 + $0xbc] sm:$0xf]
  %v92 = vld [vmem:[%s1 + $0xc0] sm:$0xf]
  %v93 = vld [vmem:[%s1 + $0xc4] sm:$0xf]
  %v94 = vld [vmem:[%s1 + $0xc8] sm:$0xf]
  %v95 = vld [vmem:[%s1 + $0xcc] sm:$0xf]
  %v96 = vld [vmem:[%s1 + $0xd0] sm:$0xf]
  %v97 = vld [vmem:[%s1 + $0xd4] sm:$0xf]
  %v98 = vld [vmem:[%s1 + $0xd8] sm:$0xf]
  %v99 = vld [vmem:[%s1 + $0xdc] sm:$0xf]
  %v100 = vld [vmem:[%s1 + $0xe0] sm:$0xf]
  %v101 = vld [vmem:[%s1 + $0xe4] sm:$0xf]
  %v102 = vld [vmem:[%s1 + $0xe8] sm:$0xf]
  %v103 = vld [vmem:[%s1 + $0xec] sm:$0xf]
  %v104 = vld [vmem:[%s1 + $0xf0] sm:$0xf]
  %v105 = vld [vmem:[%s1 + $0xf4] sm:$0xf]
  %v106 = vld [vmem:[%s1 + $0xf8] sm:$0xf]
  %v107 = vld [vmem:[%s1 + $0xfc] sm:$0xf]
  %v172 = vunpack.c.l.b16 %v44
  %v173 = vunpack.c.l.b16 %v45
  %v174 = vunpack.c.l.b16 %v46
  %v175 = vunpack.c.l.b16 %v47
  %v176 = vunpack.c.l.b16 %v48
  %v177 = vunpack.c.l.b16 %v49
  %v178 = vunpack.c.l.b16 %v50
  %v179 = vunpack.c.l.b16 %v51
  %v180 = vunpack.c.l.b16 %v52
  %v181 = vunpack.c.l.b16 %v53
  %v182 = vunpack.c.l.b16 %v54
  %v183 = vunpack.c.l.b16 %v55
  %v184 = vunpack.c.l.b16 %v56
  %v185 = vunpack.c.l.b16 %v57
  %v186 = vunpack.c.l.b16 %v58
  %v187 = vunpack.c.l.b16 %v59
  %v188 = vunpack.c.l.b16 %v60
  %v189 = vunpack.c.l.b16 %v61
  %v190 = vunpack.c.l.b16 %v62
  %v191 = vunpack.c.l.b16 %v63
  %v192 = vunpack.c.l.b16 %v64
  %v193 = vunpack.c.l.b16 %v65
  %v194 = vunpack.c.l.b16 %v66
  %v195 = vunpack.c.l.b16 %v67
  %v196 = vunpack.c.l.b16 %v68
  %v197 = vunpack.c.l.b16 %v69
  %v198 = vunpack.c.l.b16 %v70
  %v199 = vunpack.c.l.b16 %v71
  %v200 = vunpack.c.l.b16 %v72
  %v201 = vunpack.c.l.b16 %v73
  %v202 = vunpack.c.l.b16 %v74
  %v203 = vunpack.c.l.b16 %v75
  %v204 = vunpack.c.l.b16 %v76
  %v205 = vunpack.c.l.b16 %v77
  %v206 = vunpack.c.l.b16 %v78
  %v207 = vunpack.c.l.b16 %v79
  %v208 = vunpack.c.l.b16 %v80
  %v209 = vunpack.c.l.b16 %v81
  %v210 = vunpack.c.l.b16 %v82
  %v211 = vunpack.c.l.b16 %v83
  %v212 = vunpack.c.l.b16 %v84
  %v213 = vunpack.c.l.b16 %v85
  %v214 = vunpack.c.l.b16 %v86
  %v215 = vunpack.c.l.b16 %v87
  %v216 = vunpack.c.l.b16 %v88
  %v217 = vunpack.c.l.b16 %v89
  %v218 = vunpack.c.l.b16 %v90
  %v219 = vunpack.c.l.b16 %v91
  %v220 = vunpack.c.l.b16 %v92
  %v221 = vunpack.c.l.b16 %v93
  %v222 = vunpack.c.l.b16 %v94
  %v223 = vunpack.c.l.b16 %v95
  %v224 = vunpack.c.l.b16 %v96
  %v225 = vunpack.c.l.b16 %v97
  %v226 = vunpack.c.l.b16 %v98
  %v227 = vunpack.c.l.b16 %v99
  %v228 = vunpack.c.l.b16 %v100
  %v229 = vunpack.c.l.b16 %v101
  %v230 = vunpack.c.l.b16 %v102
  %v231 = vunpack.c.l.b16 %v103
  %v232 = vunpack.c.l.b16 %v104
  %v233 = vunpack.c.l.b16 %v105
  %v234 = vunpack.c.l.b16 %v106
  %v235 = vunpack.c.l.b16 %v107
  %v236 = vpack.c.b16 %v173, %v172
  %v237 = vpack.c.b16 %v175, %v174
  %v238 = vpack.c.b16 %v177, %v176
  %v239 = vpack.c.b16 %v179, %v178
  %v240 = vpack.c.b16 %v181, %v180
  %v241 = vpack.c.b16 %v183, %v182
  %v242 = vpack.c.b16 %v185, %v184
  %v243 = vpack.c.b16 %v187, %v186
  %v244 = vpack.c.b16 %v189, %v188
  %v245 = vpack.c.b16 %v191, %v190
  %v246 = vpack.c.b16 %v193, %v192
  %v247 = vpack.c.b16 %v195, %v194
  %v248 = vpack.c.b16 %v197, %v196
  %v249 = vpack.c.b16 %v199, %v198
  %v250 = vpack.c.b16 %v201, %v200
  %v251 = vpack.c.b16 %v203, %v202
  %v252 = vpack.c.b16 %v205, %v204
  %v253 = vpack.c.b16 %v207, %v206
  %v254 = vpack.c.b16 %v209, %v208
  %v255 = vpack.c.b16 %v211, %v210
  %v256 = vpack.c.b16 %v213, %v212
  %v257 = vpack.c.b16 %v215, %v214
  %v258 = vpack.c.b16 %v217, %v216
  %v259 = vpack.c.b16 %v219, %v218
  %v260 = vpack.c.b16 %v221, %v220
  %v261 = vpack.c.b16 %v223, %v222
  %v262 = vpack.c.b16 %v225, %v224
  %v263 = vpack.c.b16 %v227, %v226
  %v264 = vpack.c.b16 %v229, %v228
  %v265 = vpack.c.b16 %v231, %v230
  %v266 = vpack.c.b16 %v233, %v232
  %v267 = vpack.c.b16 %v235, %v234
  %300 = vmatpush.bf16.msra.mxu0 %v243
  %301 = vmatpush.bf16.msra.mxu0 %v242
  %302 = vmatpush.bf16.msra.mxu0 %v241
  %303 = vmatpush.bf16.msra.mxu0 %v240
  %304 = vmatpush.bf16.msra.mxu0 %v239
  %305 = vmatpush.bf16.msra.mxu0 %v238
  %306 = vmatpush.bf16.msra.mxu0 %v237
  %307 = vmatpush.bf16.msra.mxu0 %v236
  %308 = vmatmul.bf16.gmra.mxu0 %v36
  %v309 = vpop.f32.mrf.mxu0
  %v310 = vadd.f32 0.0, %v309
  %v311 = vpop.f32.mrf.mxu0
  %v312 = vadd.f32 0.0, %v311
  %313 = vmatmul.bf16.gmra.mxu0 %v40
  %v314 = vpop.f32.mrf.mxu0
  %v315 = vadd.f32 0.0, %v314
  %v316 = vpop.f32.mrf.mxu0
  %317 = vdwg.mxu0
  %318 = vmatpush.bf16.msra.mxu0 %v251
  %319 = vmatpush.bf16.msra.mxu0 %v250
  %320 = vmatpush.bf16.msra.mxu0 %v249
  %321 = vmatpush.bf16.msra.mxu0 %v248
  %322 = vmatpush.bf16.msra.mxu0 %v247
  %323 = vmatpush.bf16.msra.mxu0 %v246
  %324 = vmatpush.bf16.msra.mxu0 %v245
  %325 = vmatpush.bf16.msra.mxu0 %v244
  %326 = vmatmul.bf16.gmra.mxu0 %v37
  %v327 = vpop.f32.mrf.mxu0
  %v328 = vadd.f32 %v310, %v327
  %v329 = vpop.f32.mrf.mxu0
  %v330 = vadd.f32 %v312, %v329
  %331 = vmatmul.bf16.gmra.mxu0 %v41
  %v332 = vpop.f32.mrf.mxu0
  %v333 = vadd.f32 %v315, %v332
  %v334 = vpop.f32.mrf.mxu0
  %335 = vdwg.mxu0
  %336 = vmatpush.bf16.msra.mxu0 %v259
  %337 = vmatpush.bf16.msra.mxu0 %v258
  %338 = vmatpush.bf16.msra.mxu0 %v257
  %339 = vmatpush.bf16.msra.mxu0 %v256
  %340 = vmatpush.bf16.msra.mxu0 %v255
  %341 = vmatpush.bf16.msra.mxu0 %v254
  %342 = vmatpush.bf16.msra.mxu0 %v253
  %343 = vmatpush.bf16.msra.mxu0 %v252
  %344 = vmatmul.bf16.gmra.mxu0 %v38
  %v345 = vpop.f32.mrf.mxu0
  %v346 = vadd.f32 %v328, %v345
  %v347 = vpop.f32.mrf.mxu0
  %v348 = vadd.f32 %v330, %v347
  %349 = vmatmul.bf16.gmra.mxu0 %v42
  %v350 = vpop.f32.mrf.mxu0
  %v351 = vadd.f32 %v333, %v350
  %v352 = vpop.f32.mrf.mxu0
  %353 = vdwg.mxu0
  %354 = vmatpush.bf16.msra.mxu0 %v267
  %355 = vmatpush.bf16.msra.mxu0 %v266
  %356 = vmatpush.bf16.msra.mxu0 %v265
  %357 = vmatpush.bf16.msra.mxu0 %v264
  %358 = vmatpush.bf16.msra.mxu0 %v263
  %359 = vmatpush.bf16.msra.mxu0 %v262
  %360 = vmatpush.bf16.msra.mxu0 %v261
  %361 = vmatpush.bf16.msra.mxu0 %v260
  %362 = vmatmul.bf16.gmra.mxu0 %v39
  %v363 = vpop.f32.mrf.mxu0
  %v364 = vadd.f32 %v346, %v363
  %v365 = vpop.f32.mrf.mxu0
  %v366 = vadd.f32 %v348, %v365
  %367 = vmatmul.bf16.gmra.mxu0 %v43
  %v368 = vpop.f32.mrf.mxu0
  %v369 = vadd.f32 %v351, %v368
  %v370 = vpop.f32.mrf.mxu0
  %371 = vdwg.mxu0
  %v372 = vadd.f32 %v21, %v364
  %v373 = vadd.f32 %v22, %v366
  %v374 = vadd.f32 %v23, %v369
  %375 = vst [vmem:[#allocation2] sm:$0xff] %v372
  %376 = vst [vmem:[#allocation2 + $0x8] sm:$0xff] %v373
  %377 = vst [vmem:[#allocation2 + $0x10] sm:$0xff] %v374
  // Predicated region
  $region18: #{network_forward.5} parent=0 // pred_check
    %p378 = pneg %p14
  $region19: #{network_forward.5} parent=0 // pred_check_branch
    %380 = sbr.rel (%p378) target = $region21
  $region20: #{network_forward.5} parent=0 // pred_region
    %v381 = vld [vmem:[#allocation2] sm:$0xff]
    %v382 = vld [vmem:[#allocation2 + $0x8] sm:$0xff]
    %v383 = vld [vmem:[#allocation2 + $0x10] sm:$0xff]
    %v384 = vld [vmem:[%s2] sm:$0x1]
    %v386 = vperm.slane %v384, 0
    %v388 = vadd.f32 %v381, %v386
    %v389 = vadd.f32 %v382, %v386
    %v390 = vadd.f32 %v383, %v386
    %v391 = vmax.f32 %v388, 0.0
    %v392 = vmax.f32 %v389, 0.0
    %v393 = vmax.f32 %v390, 0.0
    %394 = vst [vmem:[%s3] sm:$0xff] %v391
    %395 = vst [vmem:[%s3 + $0x8] sm:$0xff] %v392
    %396 = vst [vmem:[%s3 + $0x10] sm:$0xff] %v393
  $region21: #{network_forward.5} parent=0 // pred_fallthru
    _
  // Predicated region
  $region22: #{network_forward.5} parent=0 // pred_check
    _
  $region23: #{network_forward.5} parent=0 // pred_check_branch
    %398 = sbr.rel (0) target = $region25
  $region24: #{network_forward.5} parent=0 // pred_region
    _
  $region25: #{network_forward.5} parent=0 // pred_fallthru
    _
  // Predicated region
  $region26: #{network_forward.5} parent=0 // pred_check
    _
  $region27: #{network_forward.5} parent=0 // pred_check_branch
    %400 = sbr.rel (0) target = $region29
  $region28: #{network_forward.5} parent=0 // pred_region
    _
  $region29: #{network_forward.5} parent=0 // pred_fallthru
    _

// kernel: network_forward.6
$region0: #{network_forward.6}
  #allocation0 [shape = 'u32[]', space=smem, size = 0x4, offset = 0x4, fixed_abs, tag = 'smem constant byte address 0x4 - core index']
  #allocation1 [shape = 'u32[72,128]{1,0:T(1,128)}', space=vmem, size = 0x9000, scoped, tag = 'internal scratch']
  #allocation2 [shape = 'f32[8,128]{1,0:T(8,128)}', space=vmem, size = 0x1000, scoped, tag = 'scratch operand']
  %s0 = inlined_call_operand.vmem [shape: f32[8,640], index: 0, kind: input, shape index: {}]
  %s1 = inlined_call_operand.vmem [shape: bf16[640,128], index: 1, kind: input, shape index: {}]
  %s2 = inlined_call_operand.vmem [shape: f32[1,128], index: 2, kind: input, shape index: {}]
  %s3 = inlined_call_operand.vmem [shape: f32[8,128], index: 3, kind: output, shape index: {}]
  %s4 = sld [smem:[#allocation0]]
  $region30: #{network_forward.6} parent=0
    _
  %s6 = ssub.s32 1, %s4
  %s7 = scalar_select 0, %s6, %s4
  // Predicated region
  $region2: #{network_forward.6} parent=0 // pred_check
    _
  $region3: #{network_forward.6} parent=0 // pred_check_branch
    %9 = sbr.rel (0) target = $region5
  $region4: #{network_forward.6} parent=0 // pred_region
    _
  $region5: #{network_forward.6} parent=0 // pred_fallthru
    _
  // Predicated region
  $region6: #{network_forward.6} parent=0 // pred_check
    _
  $region7: #{network_forward.6} parent=0 // pred_check_branch
    %11 = sbr.rel (0) target = $region9
  $region8: #{network_forward.6} parent=0 // pred_region
    _
  $region9: #{network_forward.6} parent=0 // pred_fallthru
    _
  // Predicated region
  $region10: #{network_forward.6} parent=0 // pred_check
    _
  $region11: #{network_forward.6} parent=0 // pred_check_branch
    %13 = sbr.rel (0) target = $region13
  $region12: #{network_forward.6} parent=0 // pred_region
    _
  $region13: #{network_forward.6} parent=0 // pred_fallthru
    _
  %p14 = scmp.eq.s32.totalorder 0, 0
  // Predicated region
  $region14: #{network_forward.6} parent=0 // pred_check
    %p15 = pneg %p14
  $region15: #{network_forward.6} parent=0 // pred_check_branch
    %17 = sbr.rel (%p15) target = $region17
  $region16: #{network_forward.6} parent=0 // pred_region
    %18 = vst [vmem:[#allocation2] sm:$0xff] 0.0
  $region17: #{network_forward.6} parent=0 // pred_fallthru
    _
  %v19 = vld [vmem:[#allocation2] sm:$0xff]
  %v20 = vld [vmem:[%s0] sm:$0xff]
  %v21 = vld [vmem:[%s0 + $0x8] sm:$0xff]
  %v22 = vld [vmem:[%s0 + $0x10] sm:$0xff]
  %v23 = vld [vmem:[%s0 + $0x18] sm:$0xff]
  %v24 = vld [vmem:[%s0 + $0x20] sm:$0xff]
  %v25 = vpack.c.bf16 %v20, %v20
  %v26 = vpack.c.bf16 %v21, %v21
  %v27 = vpack.c.bf16 %v22, %v22
  %v28 = vpack.c.bf16 %v23, %v23
  %v29 = vpack.c.bf16 %v24, %v24
  %v30 = vld [vmem:[%s1] sm:$0xf]
  %v31 = vld [vmem:[%s1 + $0x4] sm:$0xf]
  %v32 = vld [vmem:[%s1 + $0x8] sm:$0xf]
  %v33 = vld [vmem:[%s1 + $0xc] sm:$0xf]
  %v34 = vld [vmem:[%s1 + $0x10] sm:$0xf]
  %v35 = vld [vmem:[%s1 + $0x14] sm:$0xf]
  %v36 = vld [vmem:[%s1 + $0x18] sm:$0xf]
  %v37 = vld [vmem:[%s1 + $0x1c] sm:$0xf]
  %v38 = vld [vmem:[%s1 + $0x20] sm:$0xf]
  %v39 = vld [vmem:[%s1 + $0x24] sm:$0xf]
  %v40 = vld [vmem:[%s1 + $0x28] sm:$0xf]
  %v41 = vld [vmem:[%s1 + $0x2c] sm:$0xf]
  %v42 = vld [vmem:[%s1 + $0x30] sm:$0xf]
  %v43 = vld [vmem:[%s1 + $0x34] sm:$0xf]
  %v44 = vld [vmem:[%s1 + $0x38] sm:$0xf]
  %v45 = vld [vmem:[%s1 + $0x3c] sm:$0xf]
  %v46 = vld [vmem:[%s1 + $0x40] sm:$0xf]
  %v47 = vld [vmem:[%s1 + $0x44] sm:$0xf]
  %v48 = vld [vmem:[%s1 + $0x48] sm:$0xf]
  %v49 = vld [vmem:[%s1 + $0x4c] sm:$0xf]
  %v50 = vld [vmem:[%s1 + $0x50] sm:$0xf]
  %v51 = vld [vmem:[%s1 + $0x54] sm:$0xf]
  %v52 = vld [vmem:[%s1 + $0x58] sm:$0xf]
  %v53 = vld [vmem:[%s1 + $0x5c] sm:$0xf]
  %v54 = vld [vmem:[%s1 + $0x60] sm:$0xf]
  %v55 = vld [vmem:[%s1 + $0x64] sm:$0xf]
  %v56 = vld [vmem:[%s1 + $0x68] sm:$0xf]
  %v57 = vld [vmem:[%s1 + $0x6c] sm:$0xf]
  %v58 = vld [vmem:[%s1 + $0x70] sm:$0xf]
  %v59 = vld [vmem:[%s1 + $0x74] sm:$0xf]
  %v60 = vld [vmem:[%s1 + $0x78] sm:$0xf]
  %v61 = vld [vmem:[%s1 + $0x7c] sm:$0xf]
  %v62 = vld [vmem:[%s1 + $0x80] sm:$0xf]
  %v63 = vld [vmem:[%s1 + $0x84] sm:$0xf]
  %v64 = vld [vmem:[%s1 + $0x88] sm:$0xf]
  %v65 = vld [vmem:[%s1 + $0x8c] sm:$0xf]
  %v66 = vld [vmem:[%s1 + $0x90] sm:$0xf]
  %v67 = vld [vmem:[%s1 + $0x94] sm:$0xf]
  %v68 = vld [vmem:[%s1 + $0x98] sm:$0xf]
  %v69 = vld [vmem:[%s1 + $0x9c] sm:$0xf]
  %v70 = vld [vmem:[%s1 + $0xa0] sm:$0xf]
  %v71 = vld [vmem:[%s1 + $0xa4] sm:$0xf]
  %v72 = vld [vmem:[%s1 + $0xa8] sm:$0xf]
  %v73 = vld [vmem:[%s1 + $0xac] sm:$0xf]
  %v74 = vld [vmem:[%s1 + $0xb0] sm:$0xf]
  %v75 = vld [vmem:[%s1 + $0xb4] sm:$0xf]
  %v76 = vld [vmem:[%s1 + $0xb8] sm:$0xf]
  %v77 = vld [vmem:[%s1 + $0xbc] sm:$0xf]
  %v78 = vld [vmem:[%s1 + $0xc0] sm:$0xf]
  %v79 = vld [vmem:[%s1 + $0xc4] sm:$0xf]
  %v80 = vld [vmem:[%s1 + $0xc8] sm:$0xf]
  %v81 = vld [vmem:[%s1 + $0xcc] sm:$0xf]
  %v82 = vld [vmem:[%s1 + $0xd0] sm:$0xf]
  %v83 = vld [vmem:[%s1 + $0xd4] sm:$0xf]
  %v84 = vld [vmem:[%s1 + $0xd8] sm:$0xf]
  %v85 = vld [vmem:[%s1 + $0xdc] sm:$0xf]
  %v86 = vld [vmem:[%s1 + $0xe0] sm:$0xf]
  %v87 = vld [vmem:[%s1 + $0xe4] sm:$0xf]
  %v88 = vld [vmem:[%s1 + $0xe8] sm:$0xf]
  %v89 = vld [vmem:[%s1 + $0xec] sm:$0xf]
  %v90 = vld [vmem:[%s1 + $0xf0] sm:$0xf]
  %v91 = vld [vmem:[%s1 + $0xf4] sm:$0xf]
  %v92 = vld [vmem:[%s1 + $0xf8] sm:$0xf]
  %v93 = vld [vmem:[%s1 + $0xfc] sm:$0xf]
  %v94 = vld [vmem:[%s1 + $0x100] sm:$0xf]
  %v95 = vld [vmem:[%s1 + $0x104] sm:$0xf]
  %v96 = vld [vmem:[%s1 + $0x108] sm:$0xf]
  %v97 = vld [vmem:[%s1 + $0x10c] sm:$0xf]
  %v98 = vld [vmem:[%s1 + $0x110] sm:$0xf]
  %v99 = vld [vmem:[%s1 + $0x114] sm:$0xf]
  %v100 = vld [vmem:[%s1 + $0x118] sm:$0xf]
  %v101 = vld [vmem:[%s1 + $0x11c] sm:$0xf]
  %v102 = vld [vmem:[%s1 + $0x120] sm:$0xf]
  %v103 = vld [vmem:[%s1 + $0x124] sm:$0xf]
  %v104 = vld [vmem:[%s1 + $0x128] sm:$0xf]
  %v105 = vld [vmem:[%s1 + $0x12c] sm:$0xf]
  %v106 = vld [vmem:[%s1 + $0x130] sm:$0xf]
  %v107 = vld [vmem:[%s1 + $0x134] sm:$0xf]
  %v108 = vld [vmem:[%s1 + $0x138] sm:$0xf]
  %v109 = vld [vmem:[%s1 + $0x13c] sm:$0xf]
  %v190 = vunpack.c.l.b16 %v30
  %v191 = vunpack.c.l.b16 %v31
  %v192 = vunpack.c.l.b16 %v32
  %v193 = vunpack.c.l.b16 %v33
  %v194 = vunpack.c.l.b16 %v34
  %v195 = vunpack.c.l.b16 %v35
  %v196 = vunpack.c.l.b16 %v36
  %v197 = vunpack.c.l.b16 %v37
  %v198 = vunpack.c.l.b16 %v38
  %v199 = vunpack.c.l.b16 %v39
  %v200 = vunpack.c.l.b16 %v40
  %v201 = vunpack.c.l.b16 %v41
  %v202 = vunpack.c.l.b16 %v42
  %v203 = vunpack.c.l.b16 %v43
  %v204 = vunpack.c.l.b16 %v44
  %v205 = vunpack.c.l.b16 %v45
  %v206 = vunpack.c.l.b16 %v46
  %v207 = vunpack.c.l.b16 %v47
  %v208 = vunpack.c.l.b16 %v48
  %v209 = vunpack.c.l.b16 %v49
  %v210 = vunpack.c.l.b16 %v50
  %v211 = vunpack.c.l.b16 %v51
  %v212 = vunpack.c.l.b16 %v52
  %v213 = vunpack.c.l.b16 %v53
  %v214 = vunpack.c.l.b16 %v54
  %v215 = vunpack.c.l.b16 %v55
  %v216 = vunpack.c.l.b16 %v56
  %v217 = vunpack.c.l.b16 %v57
  %v218 = vunpack.c.l.b16 %v58
  %v219 = vunpack.c.l.b16 %v59
  %v220 = vunpack.c.l.b16 %v60
  %v221 = vunpack.c.l.b16 %v61
  %v222 = vunpack.c.l.b16 %v62
  %v223 = vunpack.c.l.b16 %v63
  %v224 = vunpack.c.l.b16 %v64
  %v225 = vunpack.c.l.b16 %v65
  %v226 = vunpack.c.l.b16 %v66
  %v227 = vunpack.c.l.b16 %v67
  %v228 = vunpack.c.l.b16 %v68
  %v229 = vunpack.c.l.b16 %v69
  %v230 = vunpack.c.l.b16 %v70
  %v231 = vunpack.c.l.b16 %v71
  %v232 = vunpack.c.l.b16 %v72
  %v233 = vunpack.c.l.b16 %v73
  %v234 = vunpack.c.l.b16 %v74
  %v235 = vunpack.c.l.b16 %v75
  %v236 = vunpack.c.l.b16 %v76
  %v237 = vunpack.c.l.b16 %v77
  %v238 = vunpack.c.l.b16 %v78
  %v239 = vunpack.c.l.b16 %v79
  %v240 = vunpack.c.l.b16 %v80
  %v241 = vunpack.c.l.b16 %v81
  %v242 = vunpack.c.l.b16 %v82
  %v243 = vunpack.c.l.b16 %v83
  %v244 = vunpack.c.l.b16 %v84
  %v245 = vunpack.c.l.b16 %v85
  %v246 = vunpack.c.l.b16 %v86
  %v247 = vunpack.c.l.b16 %v87
  %v248 = vunpack.c.l.b16 %v88
  %v249 = vunpack.c.l.b16 %v89
  %v250 = vunpack.c.l.b16 %v90
  %v251 = vunpack.c.l.b16 %v91
  %v252 = vunpack.c.l.b16 %v92
  %v253 = vunpack.c.l.b16 %v93
  %v254 = vunpack.c.l.b16 %v94
  %v255 = vunpack.c.l.b16 %v95
  %v256 = vunpack.c.l.b16 %v96
  %v257 = vunpack.c.l.b16 %v97
  %v258 = vunpack.c.l.b16 %v98
  %v259 = vunpack.c.l.b16 %v99
  %v260 = vunpack.c.l.b16 %v100
  %v261 = vunpack.c.l.b16 %v101
  %v262 = vunpack.c.l.b16 %v102
  %v263 = vunpack.c.l.b16 %v103
  %v264 = vunpack.c.l.b16 %v104
  %v265 = vunpack.c.l.b16 %v105
  %v266 = vunpack.c.l.b16 %v106
  %v267 = vunpack.c.l.b16 %v107
  %v268 = vunpack.c.l.b16 %v108
  %v269 = vunpack.c.l.b16 %v109
  %v270 = vpack.c.b16 %v191, %v190
  %v271 = vpack.c.b16 %v193, %v192
  %v272 = vpack.c.b16 %v195, %v194
  %v273 = vpack.c.b16 %v197, %v196
  %v274 = vpack.c.b16 %v199, %v198
  %v275 = vpack.c.b16 %v201, %v200
  %v276 = vpack.c.b16 %v203, %v202
  %v277 = vpack.c.b16 %v205, %v204
  %v278 = vpack.c.b16 %v207, %v206
  %v279 = vpack.c.b16 %v209, %v208
  %v280 = vpack.c.b16 %v211, %v210
  %v281 = vpack.c.b16 %v213, %v212
  %v282 = vpack.c.b16 %v215, %v214
  %v283 = vpack.c.b16 %v217, %v216
  %v284 = vpack.c.b16 %v219, %v218
  %v285 = vpack.c.b16 %v221, %v220
  %v286 = vpack.c.b16 %v223, %v222
  %v287 = vpack.c.b16 %v225, %v224
  %v288 = vpack.c.b16 %v227, %v226
  %v289 = vpack.c.b16 %v229, %v228
  %v290 = vpack.c.b16 %v231, %v230
  %v291 = vpack.c.b16 %v233, %v232
  %v292 = vpack.c.b16 %v235, %v234
  %v293 = vpack.c.b16 %v237, %v236
  %v294 = vpack.c.b16 %v239, %v238
  %v295 = vpack.c.b16 %v241, %v240
  %v296 = vpack.c.b16 %v243, %v242
  %v297 = vpack.c.b16 %v245, %v244
  %v298 = vpack.c.b16 %v247, %v246
  %v299 = vpack.c.b16 %v249, %v248
  %v300 = vpack.c.b16 %v251, %v250
  %v301 = vpack.c.b16 %v253, %v252
  %v302 = vpack.c.b16 %v255, %v254
  %v303 = vpack.c.b16 %v257, %v256
  %v304 = vpack.c.b16 %v259, %v258
  %v305 = vpack.c.b16 %v261, %v260
  %v306 = vpack.c.b16 %v263, %v262
  %v307 = vpack.c.b16 %v265, %v264
  %v308 = vpack.c.b16 %v267, %v266
  %v309 = vpack.c.b16 %v269, %v268
  %350 = vmatpush.bf16.msra.mxu0 %v277
  %351 = vmatpush.bf16.msra.mxu0 %v276
  %352 = vmatpush.bf16.msra.mxu0 %v275
  %353 = vmatpush.bf16.msra.mxu0 %v274
  %354 = vmatpush.bf16.msra.mxu0 %v273
  %355 = vmatpush.bf16.msra.mxu0 %v272
  %356 = vmatpush.bf16.msra.mxu0 %v271
  %357 = vmatpush.bf16.msra.mxu0 %v270
  %358 = vmatmul.bf16.gmra.mxu0 %v25
  %v359 = vpop.f32.mrf.mxu0
  %v360 = vadd.f32 0.0, %v359
  %v361 = vpop.f32.mrf.mxu0
  %362 = vdwg.mxu0
  %363 = vmatpush.bf16.msra.mxu0 %v285
  %364 = vmatpush.bf16.msra.mxu0 %v284
  %365 = vmatpush.bf16.msra.mxu0 %v283
  %366 = vmatpush.bf16.msra.mxu0 %v282
  %367 = vmatpush.bf16.msra.mxu0 %v281
  %368 = vmatpush.bf16.msra.mxu0 %v280
  %369 = vmatpush.bf16.msra.mxu0 %v279
  %370 = vmatpush.bf16.msra.mxu0 %v278
  %371 = vmatmul.bf16.gmra.mxu0 %v26
  %v372 = vpop.f32.mrf.mxu0
  %v373 = vadd.f32 %v360, %v372
  %v374 = vpop.f32.mrf.mxu0
  %375 = vdwg.mxu0
  %376 = vmatpush.bf16.msra.mxu0 %v293
  %377 = vmatpush.bf16.msra.mxu0 %v292
  %378 = vmatpush.bf16.msra.mxu0 %v291
  %379 = vmatpush.bf16.msra.mxu0 %v290
  %380 = vmatpush.bf16.msra.mxu0 %v289
  %381 = vmatpush.bf16.msra.mxu0 %v288
  %382 = vmatpush.bf16.msra.mxu0 %v287
  %383 = vmatpush.bf16.msra.mxu0 %v286
  %384 = vmatmul.bf16.gmra.mxu0 %v27
  %v385 = vpop.f32.mrf.mxu0
  %v386 = vadd.f32 %v373, %v385
  %v387 = vpop.f32.mrf.mxu0
  %388 = vdwg.mxu0
  %389 = vmatpush.bf16.msra.mxu0 %v301
  %390 = vmatpush.bf16.msra.mxu0 %v300
  %391 = vmatpush.bf16.msra.mxu0 %v299
  %392 = vmatpush.bf16.msra.mxu0 %v298
  %393 = vmatpush.bf16.msra.mxu0 %v297
  %394 = vmatpush.bf16.msra.mxu0 %v296
  %395 = vmatpush.bf16.msra.mxu0 %v295
  %396 = vmatpush.bf16.msra.mxu0 %v294
  %397 = vmatmul.bf16.gmra.mxu0 %v28
  %v398 = vpop.f32.mrf.mxu0
  %v399 = vadd.f32 %v386, %v398
  %v400 = vpop.f32.mrf.mxu0
  %401 = vdwg.mxu0
  %402 = vmatpush.bf16.msra.mxu0 %v309
  %403 = vmatpush.bf16.msra.mxu0 %v308
  %404 = vmatpush.bf16.msra.mxu0 %v307
  %405 = vmatpush.bf16.msra.mxu0 %v306
  %406 = vmatpush.bf16.msra.mxu0 %v305
  %407 = vmatpush.bf16.msra.mxu0 %v304
  %408 = vmatpush.bf16.msra.mxu0 %v303
  %409 = vmatpush.bf16.msra.mxu0 %v302
  %410 = vmatmul.bf16.gmra.mxu0 %v29
  %v411 = vpop.f32.mrf.mxu0
  %v412 = vadd.f32 %v399, %v411
  %v413 = vpop.f32.mrf.mxu0
  %414 = vdwg.mxu0
  %v415 = vadd.f32 %v19, %v412
  %416 = vst [vmem:[#allocation2] sm:$0xff] %v415
  // Predicated region
  $region18: #{network_forward.6} parent=0 // pred_check
    %p417 = pneg %p14
  $region19: #{network_forward.6} parent=0 // pred_check_branch
    %419 = sbr.rel (%p417) target = $region21
  $region20: #{network_forward.6} parent=0 // pred_region
    %v420 = vld [vmem:[#allocation2] sm:$0xff]
    %v421 = vld [vmem:[%s2] sm:$0x1]
    %v423 = vperm.slane %v421, 0
    %v425 = vadd.f32 %v420, %v423
    %v426 = vmax.f32 %v425, 0.0
    %427 = vst [vmem:[%s3] sm:$0xff] %v426
  $region21: #{network_forward.6} parent=0 // pred_fallthru
    _
  // Predicated region
  $region22: #{network_forward.6} parent=0 // pred_check
    _
  $region23: #{network_forward.6} parent=0 // pred_check_branch
    %429 = sbr.rel (0) target = $region25
  $region24: #{network_forward.6} parent=0 // pred_region
    _
  $region25: #{network_forward.6} parent=0 // pred_fallthru
    _
  // Predicated region
  $region26: #{network_forward.6} parent=0 // pred_check
    _
  $region27: #{network_forward.6} parent=0 // pred_check_branch
    %431 = sbr.rel (0) target = $region29
  $region28: #{network_forward.6} parent=0 // pred_region
    _
  $region29: #{network_forward.6} parent=0 // pred_fallthru
    _

// kernel: network_forward.7
$region0: #{network_forward.7}
  #allocation0 [shape = 'u32[]', space=smem, size = 0x4, offset = 0x4, fixed_abs, tag = 'smem constant byte address 0x4 - core index']
  #allocation1 [shape = 'u32[72,128]{1,0:T(1,128)}', space=vmem, size = 0x9000, scoped, tag = 'internal scratch']
  %s0 = inlined_call_operand.vmem [shape: f32[8,128], index: 0, kind: input, shape index: {}]
  %s1 = inlined_call_operand.vmem [shape: bf16[128,512], index: 1, kind: input, shape index: {}]
  %s2 = inlined_call_operand.vmem [shape: f32[1,512], index: 2, kind: input, shape index: {}]
  %s3 = inlined_call_operand.vmem [shape: bf16[512,128], index: 3, kind: input, shape index: {}]
  %s4 = inlined_call_operand.vmem [shape: f32[1,128], index: 4, kind: input, shape index: {}]
  %s5 = inlined_call_operand.vmem [shape: f32[8,128], index: 5, kind: output, shape index: {}]
  %s6 = sld [smem:[#allocation0]]
  $region30: #{network_forward.7} parent=0
    _
  %s8 = ssub.s32 1, %s6
  %s9 = scalar_select 0, %s8, %s6
  // Predicated region
  $region2: #{network_forward.7} parent=0 // pred_check
    _
  $region3: #{network_forward.7} parent=0 // pred_check_branch
    %11 = sbr.rel (0) target = $region5
  $region4: #{network_forward.7} parent=0 // pred_region
    _
  $region5: #{network_forward.7} parent=0 // pred_fallthru
    _
  // Predicated region
  $region6: #{network_forward.7} parent=0 // pred_check
    _
  $region7: #{network_forward.7} parent=0 // pred_check_branch
    %13 = sbr.rel (0) target = $region9
  $region8: #{network_forward.7} parent=0 // pred_region
    _
  $region9: #{network_forward.7} parent=0 // pred_fallthru
    _
  // Predicated region
  $region10: #{network_forward.7} parent=0 // pred_check
    _
  $region11: #{network_forward.7} parent=0 // pred_check_branch
    %15 = sbr.rel (0) target = $region13
  $region12: #{network_forward.7} parent=0 // pred_region
    _
  $region13: #{network_forward.7} parent=0 // pred_fallthru
    _
  // Predicated region
  $region14: #{network_forward.7} parent=0 // pred_check
    _
  $region15: #{network_forward.7} parent=0 // pred_check_branch
    %17 = sbr.rel (0) target = $region17
  $region16: #{network_forward.7} parent=0 // pred_region
    _
  $region17: #{network_forward.7} parent=0 // pred_fallthru
    _
  // Predicated region
  $region18: #{network_forward.7} parent=0 // pred_check
    _
  $region19: #{network_forward.7} parent=0 // pred_check_branch
    %19 = sbr.rel (0) target = $region21
  $region20: #{network_forward.7} parent=0 // pred_region
    _
  $region21: #{network_forward.7} parent=0 // pred_fallthru
    _
  %v20 = vld [vmem:[%s0] sm:$0xff]
  %v21 = vpack.c.bf16 %v20, %v20
  %v22 = vld [vmem:[%s1] sm:$0xff]
  %v23 = vld [vmem:[%s1 + $0x8] sm:$0xff]
  %v24 = vld [vmem:[%s1 + $0x10] sm:$0xff]
  %v25 = vld [vmem:[%s1 + $0x18] sm:$0xff]
  %v26 = vld [vmem:[%s1 + $0x20] sm:$0xff]
  %v27 = vld [vmem:[%s1 + $0x28] sm:$0xff]
  %v28 = vld [vmem:[%s1 + $0x30] sm:$0xff]
  %v29 = vld [vmem:[%s1 + $0x38] sm:$0xff]
  %v30 = vld [vmem:[%s1 + $0x40] sm:$0xff]
  %v31 = vld [vmem:[%s1 + $0x48] sm:$0xff]
  %v32 = vld [vmem:[%s1 + $0x50] sm:$0xff]
  %v33 = vld [vmem:[%s1 + $0x58] sm:$0xff]
  %v34 = vld [vmem:[%s1 + $0x60] sm:$0xff]
  %v35 = vld [vmem:[%s1 + $0x68] sm:$0xff]
  %v36 = vld [vmem:[%s1 + $0x70] sm:$0xff]
  %v37 = vld [vmem:[%s1 + $0x78] sm:$0xff]
  %v38 = vld [vmem:[%s1 + $0x80] sm:$0xff]
  %v39 = vld [vmem:[%s1 + $0x88] sm:$0xff]
  %v40 = vld [vmem:[%s1 + $0x90] sm:$0xff]
  %v41 = vld [vmem:[%s1 + $0x98] sm:$0xff]
  %v42 = vld [vmem:[%s1 + $0xa0] sm:$0xff]
  %v43 = vld [vmem:[%s1 + $0xa8] sm:$0xff]
  %v44 = vld [vmem:[%s1 + $0xb0] sm:$0xff]
  %v45 = vld [vmem:[%s1 + $0xb8] sm:$0xff]
  %v46 = vld [vmem:[%s1 + $0xc0] sm:$0xff]
  %v47 = vld [vmem:[%s1 + $0xc8] sm:$0xff]
  %v48 = vld [vmem:[%s1 + $0xd0] sm:$0xff]
  %v49 = vld [vmem:[%s1 + $0xd8] sm:$0xff]
  %v50 = vld [vmem:[%s1 + $0xe0] sm:$0xff]
  %v51 = vld [vmem:[%s1 + $0xe8] sm:$0xff]
  %v52 = vld [vmem:[%s1 + $0xf0] sm:$0xff]
  %v53 = vld [vmem:[%s1 + $0xf8] sm:$0xff]
  %v54 = vld [vmem:[%s2] sm:$0xf]
  %v56 = vperm.slane %v54, 0
  %v57 = vperm.slane %v54, 1
  %v58 = vperm.slane %v54, 2
  %v59 = vperm.slane %v54, 3
  %v96 = vunpack.c.l.b16 %v22
  %v97 = vunpack.c.h.b16 %v22
  %v98 = vunpack.c.l.b16 %v23
  %v99 = vunpack.c.h.b16 %v23
  %v100 = vunpack.c.l.b16 %v24
  %v101 = vunpack.c.h.b16 %v24
  %v102 = vunpack.c.l.b16 %v25
  %v103 = vunpack.c.h.b16 %v25
  %v104 = vunpack.c.l.b16 %v26
  %v105 = vunpack.c.h.b16 %v26
  %v106 = vunpack.c.l.b16 %v27
  %v107 = vunpack.c.h.b16 %v27
  %v108 = vunpack.c.l.b16 %v28
  %v109 = vunpack.c.h.b16 %v28
  %v110 = vunpack.c.l.b16 %v29
  %v111 = vunpack.c.h.b16 %v29
  %v112 = vunpack.c.l.b16 %v30
  %v113 = vunpack.c.h.b16 %v30
  %v114 = vunpack.c.l.b16 %v31
  %v115 = vunpack.c.h.b16 %v31
  %v116 = vunpack.c.l.b16 %v32
  %v117 = vunpack.c.h.b16 %v32
  %v118 = vunpack.c.l.b16 %v33
  %v119 = vunpack.c.h.b16 %v33
  %v120 = vunpack.c.l.b16 %v34
  %v121 = vunpack.c.h.b16 %v34
  %v122 = vunpack.c.l.b16 %v35
  %v123 = vunpack.c.h.b16 %v35
  %v124 = vunpack.c.l.b16 %v36
  %v125 = vunpack.c.h.b16 %v36
  %v126 = vunpack.c.l.b16 %v37
  %v127 = vunpack.c.h.b16 %v37
  %v128 = vunpack.c.l.b16 %v38
  %v129 = vunpack.c.h.b16 %v38
  %v130 = vunpack.c.l.b16 %v39
  %v131 = vunpack.c.h.b16 %v39
  %v132 = vunpack.c.l.b16 %v40
  %v133 = vunpack.c.h.b16 %v40
  %v134 = vunpack.c.l.b16 %v41
  %v135 = vunpack.c.h.b16 %v41
  %v136 = vunpack.c.l.b16 %v42
  %v137 = vunpack.c.h.b16 %v42
  %v138 = vunpack.c.l.b16 %v43
  %v139 = vunpack.c.h.b16 %v43
  %v140 = vunpack.c.l.b16 %v44
  %v141 = vunpack.c.h.b16 %v44
  %v142 = vunpack.c.l.b16 %v45
  %v143 = vunpack.c.h.b16 %v45
  %v144 = vunpack.c.l.b16 %v46
  %v145 = vunpack.c.h.b16 %v46
  %v146 = vunpack.c.l.b16 %v47
  %v147 = vunpack.c.h.b16 %v47
  %v148 = vunpack.c.l.b16 %v48
  %v149 = vunpack.c.h.b16 %v48
  %v150 = vunpack.c.l.b16 %v49
  %v151 = vunpack.c.h.b16 %v49
  %v152 = vunpack.c.l.b16 %v50
  %v153 = vunpack.c.h.b16 %v50
  %v154 = vunpack.c.l.b16 %v51
  %v155 = vunpack.c.h.b16 %v51
  %v156 = vunpack.c.l.b16 %v52
  %v157 = vunpack.c.h.b16 %v52
  %v158 = vunpack.c.l.b16 %v53
  %v159 = vunpack.c.h.b16 %v53
  %v160 = vpack.c.b16 %v100, %v96
  %v161 = vpack.c.b16 %v101, %v97
  %v162 = vpack.c.b16 %v102, %v98
  %v163 = vpack.c.b16 %v103, %v99
  %v164 = vpack.c.b16 %v108, %v104
  %v165 = vpack.c.b16 %v109, %v105
  %v166 = vpack.c.b16 %v110, %v106
  %v167 = vpack.c.b16 %v111, %v107
  %v168 = vpack.c.b16 %v116, %v112
  %v169 = vpack.c.b16 %v117, %v113
  %v170 = vpack.c.b16 %v118, %v114
  %v171 = vpack.c.b16 %v119, %v115
  %v172 = vpack.c.b16 %v124, %v120
  %v173 = vpack.c.b16 %v125, %v121
  %v174 = vpack.c.b16 %v126, %v122
  %v175 = vpack.c.b16 %v127, %v123
  %v176 = vpack.c.b16 %v132, %v128
  %v177 = vpack.c.b16 %v133, %v129
  %v178 = vpack.c.b16 %v134, %v130
  %v179 = vpack.c.b16 %v135, %v131
  %v180 = vpack.c.b16 %v140, %v136
  %v181 = vpack.c.b16 %v141, %v137
  %v182 = vpack.c.b16 %v142, %v138
  %v183 = vpack.c.b16 %v143, %v139
  %v184 = vpack.c.b16 %v148, %v144
  %v185 = vpack.c.b16 %v149, %v145
  %v186 = vpack.c.b16 %v150, %v146
  %v187 = vpack.c.b16 %v151, %v147
  %v188 = vpack.c.b16 %v156, %v152
  %v189 = vpack.c.b16 %v157, %v153
  %v190 = vpack.c.b16 %v158, %v154
  %v191 = vpack.c.b16 %v159, %v155
  %224 = vmatpush.bf16.msra.mxu0 %v188
  %225 = vmatpush.bf16.msra.mxu0 %v184
  %226 = vmatpush.bf16.msra.mxu0 %v180
  %227 = vmatpush.bf16.msra.mxu0 %v176
  %228 = vmatpush.bf16.msra.mxu0 %v172
  %229 = vmatpush.bf16.msra.mxu0 %v168
  %230 = vmatpush.bf16.msra.mxu0 %v164
  %231 = vmatpush.bf16.msra.mxu0 %v160
  %232 = vmatmul.bf16.gmra.mxu0 %v21
  %v233 = vpop.f32.mrf.mxu0
  %v234 = vadd.f32 %v56, %v233
  %v235 = vpop.f32.mrf.mxu0
  %236 = vdwg.mxu0
  %237 = vmatpush.bf16.msra.mxu0 %v189
  %238 = vmatpush.bf16.msra.mxu0 %v185
  %239 = vmatpush.bf16.msra.mxu0 %v181
  %240 = vmatpush.bf16.msra.mxu0 %v177
  %241 = vmatpush.bf16.msra.mxu0 %v173
  %242 = vmatpush.bf16.msra.mxu0 %v169
  %243 = vmatpush.bf16.msra.mxu0 %v165
  %244 = vmatpush.bf16.msra.mxu0 %v161
  %245 = vmatmul.bf16.gmra.mxu0 %v21
  %v246 = vpop.f32.mrf.mxu0
  %v247 = vadd.f32 %v57, %v246
  %v248 = vpop.f32.mrf.mxu0
  %249 = vdwg.mxu0
  %250 = vmatpush.bf16.msra.mxu0 %v190
  %251 = vmatpush.bf16.msra.mxu0 %v186
  %252 = vmatpush.bf16.msra.mxu0 %v182
  %253 = vmatpush.bf16.msra.mxu0 %v178
  %254 = vmatpush.bf16.msra.mxu0 %v174
  %255 = vmatpush.bf16.msra.mxu0 %v170
  %256 = vmatpush.bf16.msra.mxu0 %v166
  %257 = vmatpush.bf16.msra.mxu0 %v162
  %258 = vmatmul.bf16.gmra.mxu0 %v21
  %v259 = vpop.f32.mrf.mxu0
  %v260 = vadd.f32 %v58, %v259
  %v261 = vpop.f32.mrf.mxu0
  %262 = vdwg.mxu0
  %263 = vmatpush.bf16.msra.mxu0 %v191
  %264 = vmatpush.bf16.msra.mxu0 %v187
  %265 = vmatpush.bf16.msra.mxu0 %v183
  %266 = vmatpush.bf16.msra.mxu0 %v179
  %267 = vmatpush.bf16.msra.mxu0 %v175
  %268 = vmatpush.bf16.msra.mxu0 %v171
  %269 = vmatpush.bf16.msra.mxu0 %v167
  %270 = vmatpush.bf16.msra.mxu0 %v163
  %271 = vmatmul.bf16.gmra.mxu0 %v21
  %v272 = vpop.f32.mrf.mxu0
  %v273 = vadd.f32 %v59, %v272
  %v274 = vpop.f32.mrf.mxu0
  %275 = vdwg.mxu0
  %v276 = vmax.f32 %v234, 0.0
  %v277 = vmax.f32 %v247, 0.0
  %v278 = vmax.f32 %v260, 0.0
  %v279 = vmax.f32 %v273, 0.0
  %v280 = vpack.c.bf16 %v276, %v276
  %v281 = vpack.c.bf16 %v277, %v277
  %v282 = vpack.c.bf16 %v278, %v278
  %v283 = vpack.c.bf16 %v279, %v279
  %v284 = vld [vmem:[%s3] sm:$0xf]
  %v285 = vld [vmem:[%s3 + $0x4] sm:$0xf]
  %v286 = vld [vmem:[%s3 + $0x8] sm:$0xf]
  %v287 = vld [vmem:[%s3 + $0xc] sm:$0xf]
  %v288 = vld [vmem:[%s3 + $0x10] sm:$0xf]
  %v289 = vld [vmem:[%s3 + $0x14] sm:$0xf]
  %v290 = vld [vmem:[%s3 + $0x18] sm:$0xf]
  %v291 = vld [vmem:[%s3 + $0x1c] sm:$0xf]
  %v292 = vld [vmem:[%s3 + $0x20] sm:$0xf]
  %v293 = vld [vmem:[%s3 + $0x24] sm:$0xf]
  %v294 = vld [vmem:[%s3 + $0x28] sm:$0xf]
  %v295 = vld [vmem:[%s3 + $0x2c] sm:$0xf]
  %v296 = vld [vmem:[%s3 + $0x30] sm:$0xf]
  %v297 = vld [vmem:[%s3 + $0x34] sm:$0xf]
  %v298 = vld [vmem:[%s3 + $0x38] sm:$0xf]
  %v299 = vld [vmem:[%s3 + $0x3c] sm:$0xf]
  %v300 = vld [vmem:[%s3 + $0x40] sm:$0xf]
  %v301 = vld [vmem:[%s3 + $0x44] sm:$0xf]
  %v302 = vld [vmem:[%s3 + $0x48] sm:$0xf]
  %v303 = vld [vmem:[%s3 + $0x4c] sm:$0xf]
  %v304 = vld [vmem:[%s3 + $0x50] sm:$0xf]
  %v305 = vld [vmem:[%s3 + $0x54] sm:$0xf]
  %v306 = vld [vmem:[%s3 + $0x58] sm:$0xf]
  %v307 = vld [vmem:[%s3 + $0x5c] sm:$0xf]
  %v308 = vld [vmem:[%s3 + $0x60] sm:$0xf]
  %v309 = vld [vmem:[%s3 + $0x64] sm:$0xf]
  %v310 = vld [vmem:[%s3 + $0x68] sm:$0xf]
  %v311 = vld [vmem:[%s3 + $0x6c] sm:$0xf]
  %v312 = vld [vmem:[%s3 + $0x70] sm:$0xf]
  %v313 = vld [vmem:[%s3 + $0x74] sm:$0xf]
  %v314 = vld [vmem:[%s3 + $0x78] sm:$0xf]
  %v315 = vld [vmem:[%s3 + $0x7c] sm:$0xf]
  %v316 = vld [vmem:[%s3 + $0x80] sm:$0xf]
  %v317 = vld [vmem:[%s3 + $0x84] sm:$0xf]
  %v318 = vld [vmem:[%s3 + $0x88] sm:$0xf]
  %v319 = vld [vmem:[%s3 + $0x8c] sm:$0xf]
  %v320 = vld [vmem:[%s3 + $0x90] sm:$0xf]
  %v321 = vld [vmem:[%s3 + $0x94] sm:$0xf]
  %v322 = vld [vmem:[%s3 + $0x98] sm:$0xf]
  %v323 = vld [vmem:[%s3 + $0x9c] sm:$0xf]
  %v324 = vld [vmem:[%s3 + $0xa0] sm:$0xf]
  %v325 = vld [vmem:[%s3 + $0xa4] sm:$0xf]
  %v326 = vld [vmem:[%s3 + $0xa8] sm:$0xf]
  %v327 = vld [vmem:[%s3 + $0xac] sm:$0xf]
  %v328 = vld [vmem:[%s3 + $0xb0] sm:$0xf]
  %v329 = vld [vmem:[%s3 + $0xb4] sm:$0xf]
  %v330 = vld [vmem:[%s3 + $0xb8] sm:$0xf]
  %v331 = vld [vmem:[%s3 + $0xbc] sm:$0xf]
  %v332 = vld [vmem:[%s3 + $0xc0] sm:$0xf]
  %v333 = vld [vmem:[%s3 + $0xc4] sm:$0xf]
  %v334 = vld [vmem:[%s3 + $0xc8] sm:$0xf]
  %v335 = vld [vmem:[%s3 + $0xcc] sm:$0xf]
  %v336 = vld [vmem:[%s3 + $0xd0] sm:$0xf]
  %v337 = vld [vmem:[%s3 + $0xd4] sm:$0xf]
  %v338 = vld [vmem:[%s3 + $0xd8] sm:$0xf]
  %v339 = vld [vmem:[%s3 + $0xdc] sm:$0xf]
  %v340 = vld [vmem:[%s3 + $0xe0] sm:$0xf]
  %v341 = vld [vmem:[%s3 + $0xe4] sm:$0xf]
  %v342 = vld [vmem:[%s3 + $0xe8] sm:$0xf]
  %v343 = vld [vmem:[%s3 + $0xec] sm:$0xf]
  %v344 = vld [vmem:[%s3 + $0xf0] sm:$0xf]
  %v345 = vld [vmem:[%s3 + $0xf4] sm:$0xf]
  %v346 = vld [vmem:[%s3 + $0xf8] sm:$0xf]
  %v347 = vld [vmem:[%s3 + $0xfc] sm:$0xf]
  %v348 = vld [vmem:[%s4] sm:$0x1]
  %v350 = vperm.slane %v348, 0
  %v416 = vunpack.c.l.b16 %v284
  %v417 = vunpack.c.l.b16 %v285
  %v418 = vunpack.c.l.b16 %v286
  %v419 = vunpack.c.l.b16 %v287
  %v420 = vunpack.c.l.b16 %v288
  %v421 = vunpack.c.l.b16 %v289
  %v422 = vunpack.c.l.b16 %v290
  %v423 = vunpack.c.l.b16 %v291
  %v424 = vunpack.c.l.b16 %v292
  %v425 = vunpack.c.l.b16 %v293
  %v426 = vunpack.c.l.b16 %v294
  %v427 = vunpack.c.l.b16 %v295
  %v428 = vunpack.c.l.b16 %v296
  %v429 = vunpack.c.l.b16 %v297
  %v430 = vunpack.c.l.b16 %v298
  %v431 = vunpack.c.l.b16 %v299
  %v432 = vunpack.c.l.b16 %v300
  %v433 = vunpack.c.l.b16 %v301
  %v434 = vunpack.c.l.b16 %v302
  %v435 = vunpack.c.l.b16 %v303
  %v436 = vunpack.c.l.b16 %v304
  %v437 = vunpack.c.l.b16 %v305
  %v438 = vunpack.c.l.b16 %v306
  %v439 = vunpack.c.l.b16 %v307
  %v440 = vunpack.c.l.b16 %v308
  %v441 = vunpack.c.l.b16 %v309
  %v442 = vunpack.c.l.b16 %v310
  %v443 = vunpack.c.l.b16 %v311
  %v444 = vunpack.c.l.b16 %v312
  %v445 = vunpack.c.l.b16 %v313
  %v446 = vunpack.c.l.b16 %v314
  %v447 = vunpack.c.l.b16 %v315
  %v448 = vunpack.c.l.b16 %v316
  %v449 = vunpack.c.l.b16 %v317
  %v450 = vunpack.c.l.b16 %v318
  %v451 = vunpack.c.l.b16 %v319
  %v452 = vunpack.c.l.b16 %v320
  %v453 = vunpack.c.l.b16 %v321
  %v454 = vunpack.c.l.b16 %v322
  %v455 = vunpack.c.l.b16 %v323
  %v456 = vunpack.c.l.b16 %v324
  %v457 = vunpack.c.l.b16 %v325
  %v458 = vunpack.c.l.b16 %v326
  %v459 = vunpack.c.l.b16 %v327
  %v460 = vunpack.c.l.b16 %v328
  %v461 = vunpack.c.l.b16 %v329
  %v462 = vunpack.c.l.b16 %v330
  %v463 = vunpack.c.l.b16 %v331
  %v464 = vunpack.c.l.b16 %v332
  %v465 = vunpack.c.l.b16 %v333
  %v466 = vunpack.c.l.b16 %v334
  %v467 = vunpack.c.l.b16 %v335
  %v468 = vunpack.c.l.b16 %v336
  %v469 = vunpack.c.l.b16 %v337
  %v470 = vunpack.c.l.b16 %v338
  %v471 = vunpack.c.l.b16 %v339
  %v472 = vunpack.c.l.b16 %v340
  %v473 = vunpack.c.l.b16 %v341
  %v474 = vunpack.c.l.b16 %v342
  %v475 = vunpack.c.l.b16 %v343
  %v476 = vunpack.c.l.b16 %v344
  %v477 = vunpack.c.l.b16 %v345
  %v478 = vunpack.c.l.b16 %v346
  %v479 = vunpack.c.l.b16 %v347
  %v480 = vpack.c.b16 %v417, %v416
  %v481 = vpack.c.b16 %v419, %v418
  %v482 = vpack.c.b16 %v421, %v420
  %v483 = vpack.c.b16 %v423, %v422
  %v484 = vpack.c.b16 %v425, %v424
  %v485 = vpack.c.b16 %v427, %v426
  %v486 = vpack.c.b16 %v429, %v428
  %v487 = vpack.c.b16 %v431, %v430
  %v488 = vpack.c.b16 %v433, %v432
  %v489 = vpack.c.b16 %v435, %v434
  %v490 = vpack.c.b16 %v437, %v436
  %v491 = vpack.c.b16 %v439, %v438
  %v492 = vpack.c.b16 %v441, %v440
  %v493 = vpack.c.b16 %v443, %v442
  %v494 = vpack.c.b16 %v445, %v444
  %v495 = vpack.c.b16 %v447, %v446
  %v496 = vpack.c.b16 %v449, %v448
  %v497 = vpack.c.b16 %v451, %v450
  %v498 = vpack.c.b16 %v453, %v452
  %v499 = vpack.c.b16 %v455, %v454
  %v500 = vpack.c.b16 %v457, %v456
  %v501 = vpack.c.b16 %v459, %v458
  %v502 = vpack.c.b16 %v461, %v460
  %v503 = vpack.c.b16 %v463, %v462
  %v504 = vpack.c.b16 %v465, %v464
  %v505 = vpack.c.b16 %v467, %v466
  %v506 = vpack.c.b16 %v469, %v468
  %v507 = vpack.c.b16 %v471, %v470
  %v508 = vpack.c.b16 %v473, %v472
  %v509 = vpack.c.b16 %v475, %v474
  %v510 = vpack.c.b16 %v477, %v476
  %v511 = vpack.c.b16 %v479, %v478
  %544 = vmatpush.bf16.msra.mxu0 %v487
  %545 = vmatpush.bf16.msra.mxu0 %v486
  %546 = vmatpush.bf16.msra.mxu0 %v485
  %547 = vmatpush.bf16.msra.mxu0 %v484
  %548 = vmatpush.bf16.msra.mxu0 %v483
  %549 = vmatpush.bf16.msra.mxu0 %v482
  %550 = vmatpush.bf16.msra.mxu0 %v481
  %551 = vmatpush.bf16.msra.mxu0 %v480
  %552 = vmatmul.bf16.gmra.mxu0 %v280
  %v553 = vpop.f32.mrf.mxu0
  %v554 = vadd.f32 %v350, %v553
  %v555 = vpop.f32.mrf.mxu0
  %556 = vdwg.mxu0
  %557 = vmatpush.bf16.msra.mxu0 %v495
  %558 = vmatpush.bf16.msra.mxu0 %v494
  %559 = vmatpush.bf16.msra.mxu0 %v493
  %560 = vmatpush.bf16.msra.mxu0 %v492
  %561 = vmatpush.bf16.msra.mxu0 %v491
  %562 = vmatpush.bf16.msra.mxu0 %v490
  %563 = vmatpush.bf16.msra.mxu0 %v489
  %564 = vmatpush.bf16.msra.mxu0 %v488
  %565 = vmatmul.bf16.gmra.mxu0 %v281
  %v566 = vpop.f32.mrf.mxu0
  %v567 = vadd.f32 %v554, %v566
  %v568 = vpop.f32.mrf.mxu0
  %569 = vdwg.mxu0
  %570 = vmatpush.bf16.msra.mxu0 %v503
  %571 = vmatpush.bf16.msra.mxu0 %v502
  %572 = vmatpush.bf16.msra.mxu0 %v501
  %573 = vmatpush.bf16.msra.mxu0 %v500
  %574 = vmatpush.bf16.msra.mxu0 %v499
  %575 = vmatpush.bf16.msra.mxu0 %v498
  %576 = vmatpush.bf16.msra.mxu0 %v497
  %577 = vmatpush.bf16.msra.mxu0 %v496
  %578 = vmatmul.bf16.gmra.mxu0 %v282
  %v579 = vpop.f32.mrf.mxu0
  %v580 = vadd.f32 %v567, %v579
  %v581 = vpop.f32.mrf.mxu0
  %582 = vdwg.mxu0
  %583 = vmatpush.bf16.msra.mxu0 %v511
  %584 = vmatpush.bf16.msra.mxu0 %v510
  %585 = vmatpush.bf16.msra.mxu0 %v509
  %586 = vmatpush.bf16.msra.mxu0 %v508
  %587 = vmatpush.bf16.msra.mxu0 %v507
  %588 = vmatpush.bf16.msra.mxu0 %v506
  %589 = vmatpush.bf16.msra.mxu0 %v505
  %590 = vmatpush.bf16.msra.mxu0 %v504
  %591 = vmatmul.bf16.gmra.mxu0 %v283
  %v592 = vpop.f32.mrf.mxu0
  %v593 = vadd.f32 %v580, %v592
  %v594 = vpop.f32.mrf.mxu0
  %595 = vdwg.mxu0
  %596 = vst [vmem:[%s5] sm:$0xff] %v593
  // Predicated region
  $region22: #{network_forward.7} parent=0 // pred_check
    _
  $region23: #{network_forward.7} parent=0 // pred_check_branch
    %598 = sbr.rel (0) target = $region25
  $region24: #{network_forward.7} parent=0 // pred_region
    _
  $region25: #{network_forward.7} parent=0 // pred_fallthru
    _
  // Predicated region
  $region26: #{network_forward.7} parent=0 // pred_check
    _
  $region27: #{network_forward.7} parent=0 // pred_check_branch
    %600 = sbr.rel (0) target = $region29
  $region28: #{network_forward.7} parent=0 // pred_region
    _
  $region29: #{network_forward.7} parent=0 // pred_fallthru
    _

</llo_original>
